<compile_context>
chip_gen: v5e
topology: v5e:2x2
jax: 0.10.0
libtpu: 0.0.40
codegen_flags: <defaults>
</compile_context>

<pallas_src>
import numpy as np

import jax
import jax.numpy as jnp
from jax.experimental import pallas as pl
from jax.experimental.pallas import tpu as pltpu


_MiB = 1024 * 1024


def _pick_tile(dim, cap=512):
    """Largest 128-multiple tile <= cap that divides dim, else the full dim."""
    for cand in (512, 384, 256, 128):
        if cand <= cap and dim % cand == 0:
            return cand
    return dim


def _maybe_vmem_limit(need_bytes):
    """Raise the scoped-VMEM limit only when the default budget is tight."""
    if need_bytes <= 12 * _MiB:
        return None
    return min(int(need_bytes * 5 // 4), 96 * _MiB)


# ---------------------------------------------------------------------------
# Primary path: whole network fused into one pallas_call.
# ---------------------------------------------------------------------------

def _make_fused_kernel(num_layers, acc_in_output):
    inv = 1.0 / float(num_layers + 1)

    def body(a_ref, x0_ref, o_ref, x_buf, acc_ref):
        x0 = x0_ref[...]
        # Activation kept in the MXU operand dtype (bf16): one cast per layer
        # on write, half the scratch bytes of an f32 activation buffer.
        x_buf[...] = x0.astype(x_buf.dtype)
        acc_ref[...] = x0.astype(jnp.float32)        # running sum: x_0 term

        # num_layers is a static Python int -> fully unrolled at trace time
        # (state lives in VMEM refs; equivalent to fori_loop(..., unroll=True)).
        for layer in range(num_layers):
            x_new = jnp.dot(                          # bf16 x bf16 on the MXU,
                a_ref[...], x_buf[...],               # f32 accumulation.
                preferred_element_type=jnp.float32,
            )
            if layer + 1 < num_layers:                # last layer never re-read
                x_buf[...] = x_new.astype(x_buf.dtype)
            acc_ref[...] += x_new

        o_ref[...] = (acc_ref[...] * jnp.float32(inv)).astype(o_ref.dtype)

    if acc_in_output:
        # f32 output: the output block itself is the mean accumulator
        # (saves one (N, tn) f32 VMEM scratch buffer).
        def kernel(a_ref, x0_ref, o_ref, x_buf):
            body(a_ref, x0_ref, o_ref, x_buf, o_ref)
    else:
        def kernel(a_ref, x0_ref, o_ref, x_buf, acc_buf):
            body(a_ref, x0_ref, o_ref, x_buf, acc_buf)
    return kernel


def _geo_conv_fused(a_op, pois_embs, num_layers):
    """All layers + mean in one kernel; A' and activations stay in VMEM."""
    N, D = pois_embs.shape
    tn = _pick_tile(D)                # column slab; tn == D for small D
    grid = (max(D // tn, 1),)         # column slabs are independent -> parallel

    x_item = pois_embs.dtype.itemsize
    a_item = a_op.dtype.itemsize
    a_bytes = a_op.size * a_item
    acc_in_output = pois_embs.dtype == jnp.float32

    scratch = [pltpu.VMEM((N, tn), a_op.dtype)]              # current activation
    if not acc_in_output:
        scratch.append(pltpu.VMEM((N, tn), jnp.float32))     # mean accumulator

    need = (
        2 * a_bytes                   # A' (double-buffered by the pipeline)
        + 2 * N * tn * x_item         # x0 slab
        + 2 * N * tn * x_item         # output slab
        + N * tn * a_item             # activation scratch
        + (0 if acc_in_output else N * tn * 4)
    )

    cost = pl.CostEstimate(
        flops=2 * N * N * D * num_layers,
        transcendentals=0,
        bytes_accessed=a_bytes + 2 * N * D * x_item,
    )

    return pl.pallas_call(
        _make_fused_kernel(num_layers, acc_in_output),
        out_shape=jax.ShapeDtypeStruct((N, D), pois_embs.dtype),
        grid_spec=pltpu.PrefetchScalarGridSpec(
            num_scalar_prefetch=0,
            grid=grid,
            in_specs=[
                # Constant block index across the grid -> A' is fetched once.
                pl.BlockSpec((N, N), lambda j: (0, 0)),
                pl.BlockSpec((N, tn), lambda j: (0, j)),
            ],
            out_specs=pl.BlockSpec((N, tn), lambda j: (0, j)),
            scratch_shapes=scratch,
        ),
        compiler_params=pltpu.CompilerParams(
            dimension_semantics=("parallel",),
            vmem_limit_bytes=_maybe_vmem_limit(need),
        ),
        cost_estimate=cost,
    )(a_op, pois_embs)


# ---------------------------------------------------------------------------
# Fallback path: per-layer tiled matmul (A' too large to keep resident).
# ---------------------------------------------------------------------------

def _make_layer_kernel(acc_in_output):
    if acc_in_output:
        # f32 output block doubles as the K-reduction accumulator (no scratch).
        def kernel(a_ref, x_ref, o_ref):
            @pl.when(pl.program_id(2) == 0)
            def _():
                o_ref[...] = jnp.zeros_like(o_ref)

            o_ref[...] += jnp.dot(
                a_ref[...],
                x_ref[...].astype(a_ref.dtype),
                preferred_element_type=jnp.float32,
            )
    else:
        def kernel(a_ref, x_ref, o_ref, acc_ref):
            @pl.when(pl.program_id(2) == 0)
            def _():
                acc_ref[...] = jnp.zeros_like(acc_ref)

            acc_ref[...] += jnp.dot(
                a_ref[...],
                x_ref[...].astype(a_ref.dtype),
                preferred_element_type=jnp.float32,
            )

            @pl.when(pl.program_id(2) == pl.num_programs(2) - 1)
            def _():
                o_ref[...] = acc_ref[...].astype(o_ref.dtype)
    return kernel


def geo_conv_layer(a_op, x, *, tm=None, tn=None, tk=None):
    """One layer: A' @ x (residual already folded into A' = geo_graph + I)."""
    N, N2 = a_op.shape
    Nx, D = x.shape
    assert N == N2 == Nx

    if tn is None:
        # tn = D whenever reasonable so A' is streamed exactly once per layer.
        tn = D if D <= 1024 else _pick_tile(D)
    if tm is None:
        tm = _pick_tile(N)
        # Keep >= 2 row blocks so the row axis can shard across TCs (v7x).
        while N // tm < 2 and tm > 128 and tm % 2 == 0:
            tm //= 2
    if tk is None:
        tk = _pick_tile(N)
    assert N % tm == 0 and D % tn == 0 and N % tk == 0

    acc_in_output = x.dtype == jnp.float32
    scratch = [] if acc_in_output else [pltpu.VMEM((tm, tn), jnp.float32)]

    a_item = a_op.dtype.itemsize
    x_item = x.dtype.itemsize
    need = (
        2 * tm * tk * a_item
        + 2 * tk * tn * x_item
        + 2 * tm * tn * x_item
        + (0 if acc_in_output else tm * tn * 4)
    )
    cost = pl.CostEstimate(
        flops=2 * N * N * D,
        transcendentals=0,
        bytes_accessed=N * N * a_item * (D // tn) + 2 * N * D * x_item,
    )

    grid = (N // tm, D // tn, N // tk)
    return pl.pallas_call(
        _make_layer_kernel(acc_in_output),
        out_shape=jax.ShapeDtypeStruct((N, D), x.dtype),
        grid_spec=pltpu.PrefetchScalarGridSpec(
            num_scalar_prefetch=0,
            grid=grid,
            in_specs=[
                pl.BlockSpec((tm, tk), lambda i, j, k: (i, k)),
                pl.BlockSpec((tk, tn), lambda i, j, k: (k, j)),
            ],
            out_specs=pl.BlockSpec((tm, tn), lambda i, j, k: (i, j)),
            scratch_shapes=scratch,
        ),
        compiler_params=pltpu.CompilerParams(
            dimension_semantics=("parallel", "parallel", "arbitrary"),
            vmem_limit_bytes=_maybe_vmem_limit(need),
        ),
        cost_estimate=cost,
    )(a_op, x)


# ---------------------------------------------------------------------------
# Network wrapper + references.
# ---------------------------------------------------------------------------

def geo_conv_network(pois_embs, geo_graph, num_layers, *,
                     operand_dtype=jnp.bfloat16, force_tiled=False):
    """GeoConvNetwork forward: mean of [x_0, A'x_0, ..., A'^L x_0], A' = G + I."""
    N, D = pois_embs.shape
    assert geo_graph.shape == (N, N)

    # Fold the residual into the operand once (outside any layer loop) and
    # cast to bf16: halves the dominant HBM stream, bf16 MXU rate, f32 accum.
    a_op = (geo_graph + jnp.eye(N, dtype=geo_graph.dtype)).astype(operand_dtype)

    # Whole-network fusion whenever A' + activation slabs fit comfortably in
    # VMEM (conservative budget so it also holds on v7x's 64 MiB VMEM).
    tn = _pick_tile(D)
    fused_need = (2 * N * N * np.dtype(operand_dtype).itemsize
                  + 6 * N * tn * 4)
    if not force_tiled and fused_need <= 40 * _MiB:
        return _geo_conv_fused(a_op, pois_embs, num_layers)

    # Fallback: one tiled matmul kernel per layer; running mean kept in f32.
    x = pois_embs
    acc = x.astype(jnp.float32)
    for _ in range(num_layers):
        x = geo_conv_layer(a_op, x)
        acc = acc + x.astype(jnp.float32)
    return (acc / jnp.float32(num_layers + 1)).astype(pois_embs.dtype)


def geo_conv_network_ref(pois_embs, geo_graph, num_layers):
    """Pure-JAX f32 reference mirroring the PyTorch module exactly."""
    outs = [pois_embs]
    x = pois_embs
    for _ in range(num_layers):
        x = geo_graph @ x + x
        outs.append(x)
    return jnp.mean(jnp.stack(outs), axis=0)


def geo_conv_network_ref_matched(pois_embs, geo_graph, num_layers,
                                 operand_dtype=jnp.bfloat16):
    """Reference using the kernels' precision policy (bf16 operands, f32 acc)."""
    N = geo_graph.shape[0]
    a_op = (geo_graph + jnp.eye(N, dtype=geo_graph.dtype)).astype(operand_dtype)
    x = pois_embs.astype(jnp.float32)
    acc = x
    for _ in range(num_layers):
        x = jnp.dot(a_op, x.astype(operand_dtype),
                    preferred_element_type=jnp.float32)
        acc = acc + x
    return (acc / jnp.float32(num_layers + 1)).astype(pois_embs.dtype)


if __name__ == "__main__":
    key = jax.random.PRNGKey(0)
    k_emb, k_adj = jax.random.split(key)

    N, D = 256, 128          # num POIs, embedding dim (small, tile-aligned)
    NUM_LAYERS = 3

    pois_embs = jax.random.normal(k_emb, (N, D), dtype=jnp.float32)

    # Synthetic "sparse" geo graph, densified: ~5% random nonzeros,
    # row-normalized (deterministic from the PRNG key).
    # TODO(synk): torch.sparse.mm has no sparse Pallas equivalent; the graph is
    # densified to [N, N] and handled as a dense MXU matmul.
    raw = jax.random.uniform(k_adj, (N, N), dtype=jnp.float32)
    mask = (raw > 0.95).astype(jnp.float32)
    vals = mask * raw
    row_sum = jnp.maximum(vals.sum(axis=1, keepdims=True), 1e-6)
    geo_graph = vals / row_sum

    fwd = jax.jit(geo_conv_network, static_argnums=(2,),
                  static_argnames=("force_tiled",))

    out_fused = fwd(pois_embs, geo_graph, NUM_LAYERS)                    # fused
    out_tiled = fwd(pois_embs, geo_graph, NUM_LAYERS, force_tiled=True)  # tiled
    out_fused, out_tiled = jax.block_until_ready((out_fused, out_tiled))

    ref_matched = geo_conv_network_ref_matched(pois_embs, geo_graph, NUM_LAYERS)
    ref_f32 = geo_conv_network_ref(pois_embs, geo_graph, NUM_LAYERS)

    assert out_fused.shape == (N, D) and out_tiled.shape == (N, D)
    # Tight check vs a reference with the same bf16-operand / f32-accum policy.
    assert jnp.allclose(out_fused, ref_matched, atol=1e-2, rtol=1e-2)
    assert jnp.allclose(out_tiled, ref_matched, atol=1e-2, rtol=1e-2)
    # Sanity check vs the exact f32 (PyTorch-equivalent) reference.
    assert jnp.allclose(out_fused, ref_f32, atol=5e-2, rtol=5e-2)
    assert jnp.allclose(out_tiled, ref_f32, atol=5e-2, rtol=5e-2)

    print("KERNEL_OK")
</pallas_src>

<mosaic_0001>
module attributes {stable_mosaic.version = 11 : i64} {
  func.func @kernel(%arg0: i32, %arg1: memref<256x256xbf16, #tpu.memory_space<vmem>>, %arg2: memref<256x128xf32, #tpu.memory_space<vmem>>, %arg3: memref<256x128xf32, #tpu.memory_space<vmem>>, %arg4: memref<256x128xbf16, #tpu.memory_space<vmem>>) attributes {dimension_semantics = [#tpu.dimension_semantics<parallel>], iteration_bounds = array<i64: 1>, scalar_prefetch = 0 : i64, scratch_operands = 1 : i64, tpu.core_type = #tpu.core_type<tc>, window_params = [{pipeline_mode = #tpu.pipeline_mode<synchronous>, transform_indices = @transform_0, window_bounds = array<i64: 256, 256>}, {transform_indices = @transform_1, window_bounds = array<i64: 256, 128>}, {transform_indices = @transform_2, window_bounds = array<i64: 256, 128>}]} {
    %c0 = arith.constant 0 : index
    %c0_0 = arith.constant 0 : index
    %0 = vector.load %arg2[%c0, %c0_0] : memref<256x128xf32, #tpu.memory_space<vmem>>, vector<256x128xf32>
    %1 = arith.truncf %0 : vector<256x128xf32> to vector<256x128xbf16>
    %c0_1 = arith.constant 0 : index
    %c0_2 = arith.constant 0 : index
    %2 = vector.load %arg4[%c0_1, %c0_2] : memref<256x128xbf16, #tpu.memory_space<vmem>>, vector<256x128xbf16>
    tpu.vector_store %arg4[%c0_1, %c0_2], %1 {strides = array<i32>} : memref<256x128xbf16, #tpu.memory_space<vmem>>, vector<256x128xbf16>,
    %c0_3 = arith.constant 0 : index
    %c0_4 = arith.constant 0 : index
    %3 = vector.load %arg3[%c0_3, %c0_4] : memref<256x128xf32, #tpu.memory_space<vmem>>, vector<256x128xf32>
    tpu.vector_store %arg3[%c0_3, %c0_4], %0 {strides = array<i32>} : memref<256x128xf32, #tpu.memory_space<vmem>>, vector<256x128xf32>,
    %c0_5 = arith.constant 0 : index
    %c0_6 = arith.constant 0 : index
    %4 = vector.load %arg1[%c0_5, %c0_6] : memref<256x256xbf16, #tpu.memory_space<vmem>>, vector<256x256xbf16>
    %c0_7 = arith.constant 0 : index
    %c0_8 = arith.constant 0 : index
    %5 = vector.load %arg4[%c0_7, %c0_8] : memref<256x128xbf16, #tpu.memory_space<vmem>>, vector<256x128xbf16>
    %cst = arith.constant dense<0.000000e+00> : vector<256x128xf32>
    %6 = tpu.matmul %4, %5, %cst {dimension_numbers = #tpu.dot_dimension_numbers<[1], [0], [0], [1], [0, 0, 1, 1], [], []>} : vector<256x256xbf16>, vector<256x128xbf16>, vector<256x128xf32> -> vector<256x128xf32>
    %7 = arith.truncf %6 : vector<256x128xf32> to vector<256x128xbf16>
    %c0_9 = arith.constant 0 : index
    %c0_10 = arith.constant 0 : index
    %8 = vector.load %arg4[%c0_9, %c0_10] : memref<256x128xbf16, #tpu.memory_space<vmem>>, vector<256x128xbf16>
    tpu.vector_store %arg4[%c0_9, %c0_10], %7 {strides = array<i32>} : memref<256x128xbf16, #tpu.memory_space<vmem>>, vector<256x128xbf16>,
    %c0_11 = arith.constant 0 : index
    %c0_12 = arith.constant 0 : index
    %9 = vector.load %arg3[%c0_11, %c0_12] : memref<256x128xf32, #tpu.memory_space<vmem>>, vector<256x128xf32>
    %10 = arith.addf %9, %6 : vector<256x128xf32>
    %c0_13 = arith.constant 0 : index
    %c0_14 = arith.constant 0 : index
    %11 = vector.load %arg3[%c0_13, %c0_14] : memref<256x128xf32, #tpu.memory_space<vmem>>, vector<256x128xf32>
    tpu.vector_store %arg3[%c0_13, %c0_14], %10 {strides = array<i32>} : memref<256x128xf32, #tpu.memory_space<vmem>>, vector<256x128xf32>,
    %c0_15 = arith.constant 0 : index
    %c0_16 = arith.constant 0 : index
    %12 = vector.load %arg1[%c0_15, %c0_16] : memref<256x256xbf16, #tpu.memory_space<vmem>>, vector<256x256xbf16>
    %c0_17 = arith.constant 0 : index
    %c0_18 = arith.constant 0 : index
    %13 = vector.load %arg4[%c0_17, %c0_18] : memref<256x128xbf16, #tpu.memory_space<vmem>>, vector<256x128xbf16>
    %cst_19 = arith.constant dense<0.000000e+00> : vector<256x128xf32>
    %14 = tpu.matmul %12, %13, %cst_19 {dimension_numbers = #tpu.dot_dimension_numbers<[1], [0], [0], [1], [0, 0, 1, 1], [], []>} : vector<256x256xbf16>, vector<256x128xbf16>, vector<256x128xf32> -> vector<256x128xf32>
    %15 = arith.truncf %14 : vector<256x128xf32> to vector<256x128xbf16>
    %c0_20 = arith.constant 0 : index
    %c0_21 = arith.constant 0 : index
    %16 = vector.load %arg4[%c0_20, %c0_21] : memref<256x128xbf16, #tpu.memory_space<vmem>>, vector<256x128xbf16>
    tpu.vector_store %arg4[%c0_20, %c0_21], %15 {strides = array<i32>} : memref<256x128xbf16, #tpu.memory_space<vmem>>, vector<256x128xbf16>,
    %c0_22 = arith.constant 0 : index
    %c0_23 = arith.constant 0 : index
    %17 = vector.load %arg3[%c0_22, %c0_23] : memref<256x128xf32, #tpu.memory_space<vmem>>, vector<256x128xf32>
    %18 = arith.addf %17, %14 : vector<256x128xf32>
    %c0_24 = arith.constant 0 : index
    %c0_25 = arith.constant 0 : index
    %19 = vector.load %arg3[%c0_24, %c0_25] : memref<256x128xf32, #tpu.memory_space<vmem>>, vector<256x128xf32>
    tpu.vector_store %arg3[%c0_24, %c0_25], %18 {strides = array<i32>} : memref<256x128xf32, #tpu.memory_space<vmem>>, vector<256x128xf32>,
    %c0_26 = arith.constant 0 : index
    %c0_27 = arith.constant 0 : index
    %20 = vector.load %arg1[%c0_26, %c0_27] : memref<256x256xbf16, #tpu.memory_space<vmem>>, vector<256x256xbf16>
    %c0_28 = arith.constant 0 : index
    %c0_29 = arith.constant 0 : index
    %21 = vector.load %arg4[%c0_28, %c0_29] : memref<256x128xbf16, #tpu.memory_space<vmem>>, vector<256x128xbf16>
    %cst_30 = arith.constant dense<0.000000e+00> : vector<256x128xf32>
    %22 = tpu.matmul %20, %21, %cst_30 {dimension_numbers = #tpu.dot_dimension_numbers<[1], [0], [0], [1], [0, 0, 1, 1], [], []>} : vector<256x256xbf16>, vector<256x128xbf16>, vector<256x128xf32> -> vector<256x128xf32>
    %c0_31 = arith.constant 0 : index
    %c0_32 = arith.constant 0 : index
    %23 = vector.load %arg3[%c0_31, %c0_32] : memref<256x128xf32, #tpu.memory_space<vmem>>, vector<256x128xf32>
    %24 = arith.addf %23, %22 : vector<256x128xf32>
    %c0_33 = arith.constant 0 : index
    %c0_34 = arith.constant 0 : index
    %25 = vector.load %arg3[%c0_33, %c0_34] : memref<256x128xf32, #tpu.memory_space<vmem>>, vector<256x128xf32>
    tpu.vector_store %arg3[%c0_33, %c0_34], %24 {strides = array<i32>} : memref<256x128xf32, #tpu.memory_space<vmem>>, vector<256x128xf32>,
    %c0_35 = arith.constant 0 : index
    %c0_36 = arith.constant 0 : index
    %26 = vector.load %arg3[%c0_35, %c0_36] : memref<256x128xf32, #tpu.memory_space<vmem>>, vector<256x128xf32>
    %cst_37 = arith.constant 2.500000e-01 : f32
    %27 = vector.broadcast %cst_37 : f32 to vector<256x128xf32>
    %28 = arith.mulf %26, %27 : vector<256x128xf32>
    %c0_38 = arith.constant 0 : index
    %c0_39 = arith.constant 0 : index
    %29 = vector.load %arg3[%c0_38, %c0_39] : memref<256x128xf32, #tpu.memory_space<vmem>>, vector<256x128xf32>
    tpu.vector_store %arg3[%c0_38, %c0_39], %28 {strides = array<i32>} : memref<256x128xf32, #tpu.memory_space<vmem>>, vector<256x128xf32>,
    return
  }
  func.func @transform_0(%arg0: i32) -> (i32, i32) {
    %c0_i32 = arith.constant 0 : i32
    %c0_i32_0 = arith.constant 0 : i32
    %c0_i32_1 = arith.constant 0 : i32
    return %c0_i32, %c0_i32_0 : i32, i32
  }
  func.func @transform_1(%arg0: i32) -> (i32, i32) {
    %c0_i32 = arith.constant 0 : i32
    %c0_i32_0 = arith.constant 0 : i32
    return %c0_i32, %arg0 : i32, i32
  }
  func.func @transform_2(%arg0: i32) -> (i32, i32) {
    %c0_i32 = arith.constant 0 : i32
    %c0_i32_0 = arith.constant 0 : i32
    return %c0_i32, %arg0 : i32, i32
  }
}

</mosaic_0001>

<llo_original>
// kernel: geo_conv_network.1
$region0: #{geo_conv_network.1}
  #allocation0 [shape = 'u32[]', space=smem, size = 0x4, offset = 0x4, fixed_abs, tag = 'smem constant byte address 0x4 - core index']
  #allocation1 [shape = 'u32[72,128]{1,0:T(1,128)}', space=vmem, size = 0x9000, scoped, tag = 'internal scratch']
  #allocation2 [shape = 'bf16[256,128]{1,0:T(8,128)(2,1)}', space=vmem, size = 0x10000, scoped, tag = 'scratch operand']
  %s0 = inlined_call_operand.vmem [shape: bf16[256,256], index: 0, kind: input, shape index: {}]
  %s1 = inlined_call_operand.vmem [shape: f32[256,128], index: 1, kind: input, shape index: {}]
  %s2 = inlined_call_operand.hbm [shape: f32[256,128], index: 2, kind: output, shape index: {}]
  %s3 = sld [smem:[#allocation0]]
  $region18: #{geo_conv_network.1} parent=0
    _
  %s5 = ssub.s32 1, %s3
  %s6 = scalar_select 0, %s5, %s3
  $region1: #{geo_conv_network.1} parent=0
    #allocation3 [shape = 'u8[131072]{0}', space=vmem, size = 0x20000, scoped, tag = 'output window, operand 0, single buffered']
    #allocation4 [shape = 's32[1]{0}', space=sflag, size = 0x4, scoped, tag = 'scoped memory for geo_conv_network.1']
    %7 = vsyncpa [#allocation4], 0
    // Predicated region
    $region2: #{geo_conv_network.1} parent=1 // pred_check
      _
    $region3: #{geo_conv_network.1} parent=1 // pred_check_branch
      %9 = sbr.rel (0) target = $region5
    $region4: #{geo_conv_network.1} parent=1 // pred_region
      _
    $region5: #{geo_conv_network.1} parent=1 // pred_fallthru
      _
    // Predicated region
    $region6: #{geo_conv_network.1} parent=1 // pred_check
      _
    $region7: #{geo_conv_network.1} parent=1 // pred_check_branch
      %11 = sbr.rel (0) target = $region9
    $region8: #{geo_conv_network.1} parent=1 // pred_region
      _
    $region9: #{geo_conv_network.1} parent=1 // pred_fallthru
      _
    %v12 = vld [vmem:[%s1] sm:$0xff]
    %v13 = vld [vmem:[%s1 + $0x8] sm:$0xff]
    %v14 = vld [vmem:[%s1 + $0x10] sm:$0xff]
    %v15 = vld [vmem:[%s1 + $0x18] sm:$0xff]
    %v16 = vld [vmem:[%s1 + $0x20] sm:$0xff]
    %v17 = vld [vmem:[%s1 + $0x28] sm:$0xff]
    %v18 = vld [vmem:[%s1 + $0x30] sm:$0xff]
    %v19 = vld [vmem:[%s1 + $0x38] sm:$0xff]
    %v20 = vld [vmem:[%s1 + $0x40] sm:$0xff]
    %v21 = vld [vmem:[%s1 + $0x48] sm:$0xff]
    %v22 = vld [vmem:[%s1 + $0x50] sm:$0xff]
    %v23 = vld [vmem:[%s1 + $0x58] sm:$0xff]
    %v24 = vld [vmem:[%s1 + $0x60] sm:$0xff]
    %v25 = vld [vmem:[%s1 + $0x68] sm:$0xff]
    %v26 = vld [vmem:[%s1 + $0x70] sm:$0xff]
    %v27 = vld [vmem:[%s1 + $0x78] sm:$0xff]
    %v28 = vld [vmem:[%s1 + $0x80] sm:$0xff]
    %v29 = vld [vmem:[%s1 + $0x88] sm:$0xff]
    %v30 = vld [vmem:[%s1 + $0x90] sm:$0xff]
    %v31 = vld [vmem:[%s1 + $0x98] sm:$0xff]
    %v32 = vld [vmem:[%s1 + $0xa0] sm:$0xff]
    %v33 = vld [vmem:[%s1 + $0xa8] sm:$0xff]
    %v34 = vld [vmem:[%s1 + $0xb0] sm:$0xff]
    %v35 = vld [vmem:[%s1 + $0xb8] sm:$0xff]
    %v36 = vld [vmem:[%s1 + $0xc0] sm:$0xff]
    %v37 = vld [vmem:[%s1 + $0xc8] sm:$0xff]
    %v38 = vld [vmem:[%s1 + $0xd0] sm:$0xff]
    %v39 = vld [vmem:[%s1 + $0xd8] sm:$0xff]
    %v40 = vld [vmem:[%s1 + $0xe0] sm:$0xff]
    %v41 = vld [vmem:[%s1 + $0xe8] sm:$0xff]
    %v42 = vld [vmem:[%s1 + $0xf0] sm:$0xff]
    %v43 = vld [vmem:[%s1 + $0xf8] sm:$0xff]
    %v44 = vpack.c.bf16 %v12, %v12
    %v45 = vpack.c.bf16 %v13, %v13
    %v46 = vpack.c.bf16 %v14, %v14
    %v47 = vpack.c.bf16 %v15, %v15
    %v48 = vpack.c.bf16 %v16, %v16
    %v49 = vpack.c.bf16 %v17, %v17
    %v50 = vpack.c.bf16 %v18, %v18
    %v51 = vpack.c.bf16 %v19, %v19
    %v52 = vpack.c.bf16 %v20, %v20
    %v53 = vpack.c.bf16 %v21, %v21
    %v54 = vpack.c.bf16 %v22, %v22
    %v55 = vpack.c.bf16 %v23, %v23
    %v56 = vpack.c.bf16 %v24, %v24
    %v57 = vpack.c.bf16 %v25, %v25
    %v58 = vpack.c.bf16 %v26, %v26
    %v59 = vpack.c.bf16 %v27, %v27
    %v60 = vpack.c.bf16 %v28, %v28
    %v61 = vpack.c.bf16 %v29, %v29
    %v62 = vpack.c.bf16 %v30, %v30
    %v63 = vpack.c.bf16 %v31, %v31
    %v64 = vpack.c.bf16 %v32, %v32
    %v65 = vpack.c.bf16 %v33, %v33
    %v66 = vpack.c.bf16 %v34, %v34
    %v67 = vpack.c.bf16 %v35, %v35
    %v68 = vpack.c.bf16 %v36, %v36
    %v69 = vpack.c.bf16 %v37, %v37
    %v70 = vpack.c.bf16 %v38, %v38
    %v71 = vpack.c.bf16 %v39, %v39
    %v72 = vpack.c.bf16 %v40, %v40
    %v73 = vpack.c.bf16 %v41, %v41
    %v74 = vpack.c.bf16 %v42, %v42
    %v75 = vpack.c.bf16 %v43, %v43
    %76 = vst [vmem:[#allocation2] sm:$0xf] %v44
    %77 = vst [vmem:[#allocation2 + $0x4] sm:$0xf] %v45
    %78 = vst [vmem:[#allocation2 + $0x8] sm:$0xf] %v46
    %79 = vst [vmem:[#allocation2 + $0xc] sm:$0xf] %v47
    %80 = vst [vmem:[#allocation2 + $0x10] sm:$0xf] %v48
    %81 = vst [vmem:[#allocation2 + $0x14] sm:$0xf] %v49
    %82 = vst [vmem:[#allocation2 + $0x18] sm:$0xf] %v50
    %83 = vst [vmem:[#allocation2 + $0x1c] sm:$0xf] %v51
    %84 = vst [vmem:[#allocation2 + $0x20] sm:$0xf] %v52
    %85 = vst [vmem:[#allocation2 + $0x24] sm:$0xf] %v53
    %86 = vst [vmem:[#allocation2 + $0x28] sm:$0xf] %v54
    %87 = vst [vmem:[#allocation2 + $0x2c] sm:$0xf] %v55
    %88 = vst [vmem:[#allocation2 + $0x30] sm:$0xf] %v56
    %89 = vst [vmem:[#allocation2 + $0x34] sm:$0xf] %v57
    %90 = vst [vmem:[#allocation2 + $0x38] sm:$0xf] %v58
    %91 = vst [vmem:[#allocation2 + $0x3c] sm:$0xf] %v59
    %92 = vst [vmem:[#allocation2 + $0x40] sm:$0xf] %v60
    %93 = vst [vmem:[#allocation2 + $0x44] sm:$0xf] %v61
    %94 = vst [vmem:[#allocation2 + $0x48] sm:$0xf] %v62
    %95 = vst [vmem:[#allocation2 + $0x4c] sm:$0xf] %v63
    %96 = vst [vmem:[#allocation2 + $0x50] sm:$0xf] %v64
    %97 = vst [vmem:[#allocation2 + $0x54] sm:$0xf] %v65
    %98 = vst [vmem:[#allocation2 + $0x58] sm:$0xf] %v66
    %99 = vst [vmem:[#allocation2 + $0x5c] sm:$0xf] %v67
    %100 = vst [vmem:[#allocation2 + $0x60] sm:$0xf] %v68
    %101 = vst [vmem:[#allocation2 + $0x64] sm:$0xf] %v69
    %102 = vst [vmem:[#allocation2 + $0x68] sm:$0xf] %v70
    %103 = vst [vmem:[#allocation2 + $0x6c] sm:$0xf] %v71
    %104 = vst [vmem:[#allocation2 + $0x70] sm:$0xf] %v72
    %105 = vst [vmem:[#allocation2 + $0x74] sm:$0xf] %v73
    %106 = vst [vmem:[#allocation2 + $0x78] sm:$0xf] %v74
    %107 = vst [vmem:[#allocation2 + $0x7c] sm:$0xf] %v75
    %108 = vst [vmem:[#allocation3] sm:$0xff] %v12
    %109 = vst [vmem:[#allocation3 + $0x8] sm:$0xff] %v13
    %110 = vst [vmem:[#allocation3 + $0x10] sm:$0xff] %v14
    %111 = vst [vmem:[#allocation3 + $0x18] sm:$0xff] %v15
    %112 = vst [vmem:[#allocation3 + $0x20] sm:$0xff] %v16
    %113 = vst [vmem:[#allocation3 + $0x28] sm:$0xff] %v17
    %114 = vst [vmem:[#allocation3 + $0x30] sm:$0xff] %v18
    %115 = vst [vmem:[#allocation3 + $0x38] sm:$0xff] %v19
    %116 = vst [vmem:[#allocation3 + $0x40] sm:$0xff] %v20
    %117 = vst [vmem:[#allocation3 + $0x48] sm:$0xff] %v21
    %118 = vst [vmem:[#allocation3 + $0x50] sm:$0xff] %v22
    %119 = vst [vmem:[#allocation3 + $0x58] sm:$0xff] %v23
    %120 = vst [vmem:[#allocation3 + $0x60] sm:$0xff] %v24
    %121 = vst [vmem:[#allocation3 + $0x68] sm:$0xff] %v25
    %122 = vst [vmem:[#allocation3 + $0x70] sm:$0xff] %v26
    %123 = vst [vmem:[#allocation3 + $0x78] sm:$0xff] %v27
    %124 = vst [vmem:[#allocation3 + $0x80] sm:$0xff] %v28
    %125 = vst [vmem:[#allocation3 + $0x88] sm:$0xff] %v29
    %126 = vst [vmem:[#allocation3 + $0x90] sm:$0xff] %v30
    %127 = vst [vmem:[#allocation3 + $0x98] sm:$0xff] %v31
    %128 = vst [vmem:[#allocation3 + $0xa0] sm:$0xff] %v32
    %129 = vst [vmem:[#allocation3 + $0xa8] sm:$0xff] %v33
    %130 = vst [vmem:[#allocation3 + $0xb0] sm:$0xff] %v34
    %131 = vst [vmem:[#allocation3 + $0xb8] sm:$0xff] %v35
    %132 = vst [vmem:[#allocation3 + $0xc0] sm:$0xff] %v36
    %133 = vst [vmem:[#allocation3 + $0xc8] sm:$0xff] %v37
    %134 = vst [vmem:[#allocation3 + $0xd0] sm:$0xff] %v38
    %135 = vst [vmem:[#allocation3 + $0xd8] sm:$0xff] %v39
    %136 = vst [vmem:[#allocation3 + $0xe0] sm:$0xff] %v40
    %137 = vst [vmem:[#allocation3 + $0xe8] sm:$0xff] %v41
    %138 = vst [vmem:[#allocation3 + $0xf0] sm:$0xff] %v42
    %139 = vst [vmem:[#allocation3 + $0xf8] sm:$0xff] %v43
    %v140 = vld [vmem:[%s0] sm:$0xff]
    %v141 = vld [vmem:[%s0 + $0x8] sm:$0xff]
    %v142 = vld [vmem:[%s0 + $0x10] sm:$0xff]
    %v143 = vld [vmem:[%s0 + $0x18] sm:$0xff]
    %v144 = vld [vmem:[%s0 + $0x20] sm:$0xff]
    %v145 = vld [vmem:[%s0 + $0x28] sm:$0xff]
    %v146 = vld [vmem:[%s0 + $0x30] sm:$0xff]
    %v147 = vld [vmem:[%s0 + $0x38] sm:$0xff]
    %v148 = vld [vmem:[%s0 + $0x40] sm:$0xff]
    %v149 = vld [vmem:[%s0 + $0x48] sm:$0xff]
    %v150 = vld [vmem:[%s0 + $0x50] sm:$0xff]
    %v151 = vld [vmem:[%s0 + $0x58] sm:$0xff]
    %v152 = vld [vmem:[%s0 + $0x60] sm:$0xff]
    %v153 = vld [vmem:[%s0 + $0x68] sm:$0xff]
    %v154 = vld [vmem:[%s0 + $0x70] sm:$0xff]
    %v155 = vld [vmem:[%s0 + $0x78] sm:$0xff]
    %v156 = vld [vmem:[%s0 + $0x80] sm:$0xff]
    %v157 = vld [vmem:[%s0 + $0x88] sm:$0xff]
    %v158 = vld [vmem:[%s0 + $0x90] sm:$0xff]
    %v159 = vld [vmem:[%s0 + $0x98] sm:$0xff]
    %v160 = vld [vmem:[%s0 + $0xa0] sm:$0xff]
    %v161 = vld [vmem:[%s0 + $0xa8] sm:$0xff]
    %v162 = vld [vmem:[%s0 + $0xb0] sm:$0xff]
    %v163 = vld [vmem:[%s0 + $0xb8] sm:$0xff]
    %v164 = vld [vmem:[%s0 + $0xc0] sm:$0xff]
    %v165 = vld [vmem:[%s0 + $0xc8] sm:$0xff]
    %v166 = vld [vmem:[%s0 + $0xd0] sm:$0xff]
    %v167 = vld [vmem:[%s0 + $0xd8] sm:$0xff]
    %v168 = vld [vmem:[%s0 + $0xe0] sm:$0xff]
    %v169 = vld [vmem:[%s0 + $0xe8] sm:$0xff]
    %v170 = vld [vmem:[%s0 + $0xf0] sm:$0xff]
    %v171 = vld [vmem:[%s0 + $0xf8] sm:$0xff]
    %v172 = vld [vmem:[#allocation2] sm:$0xf]
    %v173 = vld [vmem:[#allocation2 + $0x4] sm:$0xf]
    %v174 = vld [vmem:[#allocation2 + $0x8] sm:$0xf]
    %v175 = vld [vmem:[#allocation2 + $0xc] sm:$0xf]
    %v176 = vld [vmem:[#allocation2 + $0x10] sm:$0xf]
    %v177 = vld [vmem:[#allocation2 + $0x14] sm:$0xf]
    %v178 = vld [vmem:[#allocation2 + $0x18] sm:$0xf]
    %v179 = vld [vmem:[#allocation2 + $0x1c] sm:$0xf]
    %v180 = vld [vmem:[#allocation2 + $0x20] sm:$0xf]
    %v181 = vld [vmem:[#allocation2 + $0x24] sm:$0xf]
    %v182 = vld [vmem:[#allocation2 + $0x28] sm:$0xf]
    %v183 = vld [vmem:[#allocation2 + $0x2c] sm:$0xf]
    %v184 = vld [vmem:[#allocation2 + $0x30] sm:$0xf]
    %v185 = vld [vmem:[#allocation2 + $0x34] sm:$0xf]
    %v186 = vld [vmem:[#allocation2 + $0x38] sm:$0xf]
    %v187 = vld [vmem:[#allocation2 + $0x3c] sm:$0xf]
    %v188 = vld [vmem:[#allocation2 + $0x40] sm:$0xf]
    %v189 = vld [vmem:[#allocation2 + $0x44] sm:$0xf]
    %v190 = vld [vmem:[#allocation2 + $0x48] sm:$0xf]
    %v191 = vld [vmem:[#allocation2 + $0x4c] sm:$0xf]
    %v192 = vld [vmem:[#allocation2 + $0x50] sm:$0xf]
    %v193 = vld [vmem:[#allocation2 + $0x54] sm:$0xf]
    %v194 = vld [vmem:[#allocation2 + $0x58] sm:$0xf]
    %v195 = vld [vmem:[#allocation2 + $0x5c] sm:$0xf]
    %v196 = vld [vmem:[#allocation2 + $0x60] sm:$0xf]
    %v197 = vld [vmem:[#allocation2 + $0x64] sm:$0xf]
    %v198 = vld [vmem:[#allocation2 + $0x68] sm:$0xf]
    %v199 = vld [vmem:[#allocation2 + $0x6c] sm:$0xf]
    %v200 = vld [vmem:[#allocation2 + $0x70] sm:$0xf]
    %v201 = vld [vmem:[#allocation2 + $0x74] sm:$0xf]
    %v202 = vld [vmem:[#allocation2 + $0x78] sm:$0xf]
    %v203 = vld [vmem:[#allocation2 + $0x7c] sm:$0xf]
    %v236 = vunpack.c.l.b16 %v140
    %v237 = vunpack.c.h.b16 %v140
    %v238 = vunpack.c.l.b16 %v141
    %v239 = vunpack.c.h.b16 %v141
    %v240 = vunpack.c.l.b16 %v142
    %v241 = vunpack.c.h.b16 %v142
    %v242 = vunpack.c.l.b16 %v143
    %v243 = vunpack.c.h.b16 %v143
    %v244 = vunpack.c.l.b16 %v144
    %v245 = vunpack.c.h.b16 %v144
    %v246 = vunpack.c.l.b16 %v145
    %v247 = vunpack.c.h.b16 %v145
    %v248 = vunpack.c.l.b16 %v146
    %v249 = vunpack.c.h.b16 %v146
    %v250 = vunpack.c.l.b16 %v147
    %v251 = vunpack.c.h.b16 %v147
    %v252 = vunpack.c.l.b16 %v148
    %v253 = vunpack.c.h.b16 %v148
    %v254 = vunpack.c.l.b16 %v149
    %v255 = vunpack.c.h.b16 %v149
    %v256 = vunpack.c.l.b16 %v150
    %v257 = vunpack.c.h.b16 %v150
    %v258 = vunpack.c.l.b16 %v151
    %v259 = vunpack.c.h.b16 %v151
    %v260 = vunpack.c.l.b16 %v152
    %v261 = vunpack.c.h.b16 %v152
    %v262 = vunpack.c.l.b16 %v153
    %v263 = vunpack.c.h.b16 %v153
    %v264 = vunpack.c.l.b16 %v154
    %v265 = vunpack.c.h.b16 %v154
    %v266 = vunpack.c.l.b16 %v155
    %v267 = vunpack.c.h.b16 %v155
    %v268 = vunpack.c.l.b16 %v156
    %v269 = vunpack.c.h.b16 %v156
    %v270 = vunpack.c.l.b16 %v157
    %v271 = vunpack.c.h.b16 %v157
    %v272 = vunpack.c.l.b16 %v158
    %v273 = vunpack.c.h.b16 %v158
    %v274 = vunpack.c.l.b16 %v159
    %v275 = vunpack.c.h.b16 %v159
    %v276 = vunpack.c.l.b16 %v160
    %v277 = vunpack.c.h.b16 %v160
    %v278 = vunpack.c.l.b16 %v161
    %v279 = vunpack.c.h.b16 %v161
    %v280 = vunpack.c.l.b16 %v162
    %v281 = vunpack.c.h.b16 %v162
    %v282 = vunpack.c.l.b16 %v163
    %v283 = vunpack.c.h.b16 %v163
    %v284 = vunpack.c.l.b16 %v164
    %v285 = vunpack.c.h.b16 %v164
    %v286 = vunpack.c.l.b16 %v165
    %v287 = vunpack.c.h.b16 %v165
    %v288 = vunpack.c.l.b16 %v166
    %v289 = vunpack.c.h.b16 %v166
    %v290 = vunpack.c.l.b16 %v167
    %v291 = vunpack.c.h.b16 %v167
    %v292 = vunpack.c.l.b16 %v168
    %v293 = vunpack.c.h.b16 %v168
    %v294 = vunpack.c.l.b16 %v169
    %v295 = vunpack.c.h.b16 %v169
    %v296 = vunpack.c.l.b16 %v170
    %v297 = vunpack.c.h.b16 %v170
    %v298 = vunpack.c.l.b16 %v171
    %v299 = vunpack.c.h.b16 %v171
    %v300 = vpack.c.b16 %v238, %v236
    %v301 = vpack.c.b16 %v239, %v237
    %v302 = vpack.c.b16 %v242, %v240
    %v303 = vpack.c.b16 %v243, %v241
    %v304 = vpack.c.b16 %v246, %v244
    %v305 = vpack.c.b16 %v247, %v245
    %v306 = vpack.c.b16 %v250, %v248
    %v307 = vpack.c.b16 %v251, %v249
    %v308 = vpack.c.b16 %v254, %v252
    %v309 = vpack.c.b16 %v255, %v253
    %v310 = vpack.c.b16 %v258, %v256
    %v311 = vpack.c.b16 %v259, %v257
    %v312 = vpack.c.b16 %v262, %v260
    %v313 = vpack.c.b16 %v263, %v261
    %v314 = vpack.c.b16 %v266, %v264
    %v315 = vpack.c.b16 %v267, %v265
    %v316 = vpack.c.b16 %v270, %v268
    %v317 = vpack.c.b16 %v271, %v269
    %v318 = vpack.c.b16 %v274, %v272
    %v319 = vpack.c.b16 %v275, %v273
    %v320 = vpack.c.b16 %v278, %v276
    %v321 = vpack.c.b16 %v279, %v277
    %v322 = vpack.c.b16 %v282, %v280
    %v323 = vpack.c.b16 %v283, %v281
    %v324 = vpack.c.b16 %v286, %v284
    %v325 = vpack.c.b16 %v287, %v285
    %v326 = vpack.c.b16 %v290, %v288
    %v327 = vpack.c.b16 %v291, %v289
    %v328 = vpack.c.b16 %v294, %v292
    %v329 = vpack.c.b16 %v295, %v293
    %v330 = vpack.c.b16 %v298, %v296
    %v331 = vpack.c.b16 %v299, %v297
    %v396 = vunpack.c.l.b16 %v172
    %v397 = vunpack.c.l.b16 %v173
    %v398 = vunpack.c.l.b16 %v174
    %v399 = vunpack.c.l.b16 %v175
    %v400 = vunpack.c.l.b16 %v176
    %v401 = vunpack.c.l.b16 %v177
    %v402 = vunpack.c.l.b16 %v178
    %v403 = vunpack.c.l.b16 %v179
    %v404 = vunpack.c.l.b16 %v180
    %v405 = vunpack.c.l.b16 %v181
    %v406 = vunpack.c.l.b16 %v182
    %v407 = vunpack.c.l.b16 %v183
    %v408 = vunpack.c.l.b16 %v184
    %v409 = vunpack.c.l.b16 %v185
    %v410 = vunpack.c.l.b16 %v186
    %v411 = vunpack.c.l.b16 %v187
    %v412 = vunpack.c.l.b16 %v188
    %v413 = vunpack.c.l.b16 %v189
    %v414 = vunpack.c.l.b16 %v190
    %v415 = vunpack.c.l.b16 %v191
    %v416 = vunpack.c.l.b16 %v192
    %v417 = vunpack.c.l.b16 %v193
    %v418 = vunpack.c.l.b16 %v194
    %v419 = vunpack.c.l.b16 %v195
    %v420 = vunpack.c.l.b16 %v196
    %v421 = vunpack.c.l.b16 %v197
    %v422 = vunpack.c.l.b16 %v198
    %v423 = vunpack.c.l.b16 %v199
    %v424 = vunpack.c.l.b16 %v200
    %v425 = vunpack.c.l.b16 %v201
    %v426 = vunpack.c.l.b16 %v202
    %v427 = vunpack.c.l.b16 %v203
    %v428 = vpack.c.b16 %v397, %v396
    %v429 = vpack.c.b16 %v399, %v398
    %v430 = vpack.c.b16 %v401, %v400
    %v431 = vpack.c.b16 %v403, %v402
    %v432 = vpack.c.b16 %v405, %v404
    %v433 = vpack.c.b16 %v407, %v406
    %v434 = vpack.c.b16 %v409, %v408
    %v435 = vpack.c.b16 %v411, %v410
    %v436 = vpack.c.b16 %v413, %v412
    %v437 = vpack.c.b16 %v415, %v414
    %v438 = vpack.c.b16 %v417, %v416
    %v439 = vpack.c.b16 %v419, %v418
    %v440 = vpack.c.b16 %v421, %v420
    %v441 = vpack.c.b16 %v423, %v422
    %v442 = vpack.c.b16 %v425, %v424
    %v443 = vpack.c.b16 %v427, %v426
    %460 = vmatpush.bf16.msra.mxu0 %v435
    %461 = vmatpush.bf16.msra.mxu0 %v434
    %462 = vmatpush.bf16.msra.mxu0 %v433
    %463 = vmatpush.bf16.msra.mxu0 %v432
    %464 = vmatpush.bf16.msra.mxu0 %v431
    %465 = vmatpush.bf16.msra.mxu0 %v430
    %466 = vmatpush.bf16.msra.mxu0 %v429
    %467 = vmatpush.bf16.msra.mxu0 %v428
    %468 = vmatmul.bf16.gmra.mxu0 %v300
    %v469 = vpop.f32.mrf.mxu0
    %v470 = vadd.f32 0.0, %v469
    %v471 = vpop.f32.mrf.mxu0
    %v472 = vadd.f32 0.0, %v471
    %473 = vmatmul.bf16.gmra.mxu0 %v302
    %v474 = vpop.f32.mrf.mxu0
    %v475 = vadd.f32 0.0, %v474
    %v476 = vpop.f32.mrf.mxu0
    %v477 = vadd.f32 0.0, %v476
    %478 = vmatmul.bf16.gmra.mxu0 %v304
    %v479 = vpop.f32.mrf.mxu0
    %v480 = vadd.f32 0.0, %v479
    %v481 = vpop.f32.mrf.mxu0
    %v482 = vadd.f32 0.0, %v481
    %483 = vmatmul.bf16.gmra.mxu0 %v306
    %v484 = vpop.f32.mrf.mxu0
    %v485 = vadd.f32 0.0, %v484
    %v486 = vpop.f32.mrf.mxu0
    %v487 = vadd.f32 0.0, %v486
    %488 = vmatmul.bf16.gmra.mxu0 %v308
    %v489 = vpop.f32.mrf.mxu0
    %v490 = vadd.f32 0.0, %v489
    %v491 = vpop.f32.mrf.mxu0
    %v492 = vadd.f32 0.0, %v491
    %493 = vmatmul.bf16.gmra.mxu0 %v310
    %v494 = vpop.f32.mrf.mxu0
    %v495 = vadd.f32 0.0, %v494
    %v496 = vpop.f32.mrf.mxu0
    %v497 = vadd.f32 0.0, %v496
    %498 = vmatmul.bf16.gmra.mxu0 %v312
    %v499 = vpop.f32.mrf.mxu0
    %v500 = vadd.f32 0.0, %v499
    %v501 = vpop.f32.mrf.mxu0
    %v502 = vadd.f32 0.0, %v501
    %503 = vmatmul.bf16.gmra.mxu0 %v314
    %v504 = vpop.f32.mrf.mxu0
    %v505 = vadd.f32 0.0, %v504
    %v506 = vpop.f32.mrf.mxu0
    %v507 = vadd.f32 0.0, %v506
    %508 = vmatmul.bf16.gmra.mxu0 %v316
    %v509 = vpop.f32.mrf.mxu0
    %v510 = vadd.f32 0.0, %v509
    %v511 = vpop.f32.mrf.mxu0
    %v512 = vadd.f32 0.0, %v511
    %513 = vmatmul.bf16.gmra.mxu0 %v318
    %v514 = vpop.f32.mrf.mxu0
    %v515 = vadd.f32 0.0, %v514
    %v516 = vpop.f32.mrf.mxu0
    %v517 = vadd.f32 0.0, %v516
    %518 = vmatmul.bf16.gmra.mxu0 %v320
    %v519 = vpop.f32.mrf.mxu0
    %v520 = vadd.f32 0.0, %v519
    %v521 = vpop.f32.mrf.mxu0
    %v522 = vadd.f32 0.0, %v521
    %523 = vmatmul.bf16.gmra.mxu0 %v322
    %v524 = vpop.f32.mrf.mxu0
    %v525 = vadd.f32 0.0, %v524
    %v526 = vpop.f32.mrf.mxu0
    %v527 = vadd.f32 0.0, %v526
    %528 = vmatmul.bf16.gmra.mxu0 %v324
    %v529 = vpop.f32.mrf.mxu0
    %v530 = vadd.f32 0.0, %v529
    %v531 = vpop.f32.mrf.mxu0
    %v532 = vadd.f32 0.0, %v531
    %533 = vmatmul.bf16.gmra.mxu0 %v326
    %v534 = vpop.f32.mrf.mxu0
    %v535 = vadd.f32 0.0, %v534
    %v536 = vpop.f32.mrf.mxu0
    %v537 = vadd.f32 0.0, %v536
    %538 = vmatmul.bf16.gmra.mxu0 %v328
    %v539 = vpop.f32.mrf.mxu0
    %v540 = vadd.f32 0.0, %v539
    %v541 = vpop.f32.mrf.mxu0
    %v542 = vadd.f32 0.0, %v541
    %543 = vmatmul.bf16.gmra.mxu0 %v330
    %v544 = vpop.f32.mrf.mxu0
    %v545 = vadd.f32 0.0, %v544
    %v546 = vpop.f32.mrf.mxu0
    %v547 = vadd.f32 0.0, %v546
    %548 = vdwg.mxu0
    %549 = vmatpush.bf16.msra.mxu0 %v443
    %550 = vmatpush.bf16.msra.mxu0 %v442
    %551 = vmatpush.bf16.msra.mxu0 %v441
    %552 = vmatpush.bf16.msra.mxu0 %v440
    %553 = vmatpush.bf16.msra.mxu0 %v439
    %554 = vmatpush.bf16.msra.mxu0 %v438
    %555 = vmatpush.bf16.msra.mxu0 %v437
    %556 = vmatpush.bf16.msra.mxu0 %v436
    %557 = vmatmul.bf16.gmra.mxu0 %v301
    %v558 = vpop.f32.mrf.mxu0
    %v559 = vadd.f32 %v470, %v558
    %v560 = vpop.f32.mrf.mxu0
    %v561 = vadd.f32 %v472, %v560
    %562 = vmatmul.bf16.gmra.mxu0 %v303
    %v563 = vpop.f32.mrf.mxu0
    %v564 = vadd.f32 %v475, %v563
    %v565 = vpop.f32.mrf.mxu0
    %v566 = vadd.f32 %v477, %v565
    %567 = vmatmul.bf16.gmra.mxu0 %v305
    %v568 = vpop.f32.mrf.mxu0
    %v569 = vadd.f32 %v480, %v568
    %v570 = vpop.f32.mrf.mxu0
    %v571 = vadd.f32 %v482, %v570
    %572 = vmatmul.bf16.gmra.mxu0 %v307
    %v573 = vpop.f32.mrf.mxu0
    %v574 = vadd.f32 %v485, %v573
    %v575 = vpop.f32.mrf.mxu0
    %v576 = vadd.f32 %v487, %v575
    %577 = vmatmul.bf16.gmra.mxu0 %v309
    %v578 = vpop.f32.mrf.mxu0
    %v579 = vadd.f32 %v490, %v578
    %v580 = vpop.f32.mrf.mxu0
    %v581 = vadd.f32 %v492, %v580
    %582 = vmatmul.bf16.gmra.mxu0 %v311
    %v583 = vpop.f32.mrf.mxu0
    %v584 = vadd.f32 %v495, %v583
    %v585 = vpop.f32.mrf.mxu0
    %v586 = vadd.f32 %v497, %v585
    %587 = vmatmul.bf16.gmra.mxu0 %v313
    %v588 = vpop.f32.mrf.mxu0
    %v589 = vadd.f32 %v500, %v588
    %v590 = vpop.f32.mrf.mxu0
    %v591 = vadd.f32 %v502, %v590
    %592 = vmatmul.bf16.gmra.mxu0 %v315
    %v593 = vpop.f32.mrf.mxu0
    %v594 = vadd.f32 %v505, %v593
    %v595 = vpop.f32.mrf.mxu0
    %v596 = vadd.f32 %v507, %v595
    %597 = vmatmul.bf16.gmra.mxu0 %v317
    %v598 = vpop.f32.mrf.mxu0
    %v599 = vadd.f32 %v510, %v598
    %v600 = vpop.f32.mrf.mxu0
    %v601 = vadd.f32 %v512, %v600
    %602 = vmatmul.bf16.gmra.mxu0 %v319
    %v603 = vpop.f32.mrf.mxu0
    %v604 = vadd.f32 %v515, %v603
    %v605 = vpop.f32.mrf.mxu0
    %v606 = vadd.f32 %v517, %v605
    %607 = vmatmul.bf16.gmra.mxu0 %v321
    %v608 = vpop.f32.mrf.mxu0
    %v609 = vadd.f32 %v520, %v608
    %v610 = vpop.f32.mrf.mxu0
    %v611 = vadd.f32 %v522, %v610
    %612 = vmatmul.bf16.gmra.mxu0 %v323
    %v613 = vpop.f32.mrf.mxu0
    %v614 = vadd.f32 %v525, %v613
    %v615 = vpop.f32.mrf.mxu0
    %v616 = vadd.f32 %v527, %v615
    %617 = vmatmul.bf16.gmra.mxu0 %v325
    %v618 = vpop.f32.mrf.mxu0
    %v619 = vadd.f32 %v530, %v618
    %v620 = vpop.f32.mrf.mxu0
    %v621 = vadd.f32 %v532, %v620
    %622 = vmatmul.bf16.gmra.mxu0 %v327
    %v623 = vpop.f32.mrf.mxu0
    %v624 = vadd.f32 %v535, %v623
    %v625 = vpop.f32.mrf.mxu0
    %v626 = vadd.f32 %v537, %v625
    %627 = vmatmul.bf16.gmra.mxu0 %v329
    %v628 = vpop.f32.mrf.mxu0
    %v629 = vadd.f32 %v540, %v628
    %v630 = vpop.f32.mrf.mxu0
    %v631 = vadd.f32 %v542, %v630
    %632 = vmatmul.bf16.gmra.mxu0 %v331
    %v633 = vpop.f32.mrf.mxu0
    %v634 = vadd.f32 %v545, %v633
    %v635 = vpop.f32.mrf.mxu0
    %v636 = vadd.f32 %v547, %v635
    %637 = vdwg.mxu0
    %v638 = vpack.c.bf16 %v559, %v559
    %v639 = vpack.c.bf16 %v561, %v561
    %v640 = vpack.c.bf16 %v564, %v564
    %v641 = vpack.c.bf16 %v566, %v566
    %v642 = vpack.c.bf16 %v569, %v569
    %v643 = vpack.c.bf16 %v571, %v571
    %v644 = vpack.c.bf16 %v574, %v574
    %v645 = vpack.c.bf16 %v576, %v576
    %v646 = vpack.c.bf16 %v579, %v579
    %v647 = vpack.c.bf16 %v581, %v581
    %v648 = vpack.c.bf16 %v584, %v584
    %v649 = vpack.c.bf16 %v586, %v586
    %v650 = vpack.c.bf16 %v589, %v589
    %v651 = vpack.c.bf16 %v591, %v591
    %v652 = vpack.c.bf16 %v594, %v594
    %v653 = vpack.c.bf16 %v596, %v596
    %v654 = vpack.c.bf16 %v599, %v599
    %v655 = vpack.c.bf16 %v601, %v601
    %v656 = vpack.c.bf16 %v604, %v604
    %v657 = vpack.c.bf16 %v606, %v606
    %v658 = vpack.c.bf16 %v609, %v609
    %v659 = vpack.c.bf16 %v611, %v611
    %v660 = vpack.c.bf16 %v614, %v614
    %v661 = vpack.c.bf16 %v616, %v616
    %v662 = vpack.c.bf16 %v619, %v619
    %v663 = vpack.c.bf16 %v621, %v621
    %v664 = vpack.c.bf16 %v624, %v624
    %v665 = vpack.c.bf16 %v626, %v626
    %v666 = vpack.c.bf16 %v629, %v629
    %v667 = vpack.c.bf16 %v631, %v631
    %v668 = vpack.c.bf16 %v634, %v634
    %v669 = vpack.c.bf16 %v636, %v636
    %670 = vst [vmem:[#allocation2] sm:$0xf] %v638
    %671 = vst [vmem:[#allocation2 + $0x4] sm:$0xf] %v639
    %672 = vst [vmem:[#allocation2 + $0x8] sm:$0xf] %v640
    %673 = vst [vmem:[#allocation2 + $0xc] sm:$0xf] %v641
    %674 = vst [vmem:[#allocation2 + $0x10] sm:$0xf] %v642
    %675 = vst [vmem:[#allocation2 + $0x14] sm:$0xf] %v643
    %676 = vst [vmem:[#allocation2 + $0x18] sm:$0xf] %v644
    %677 = vst [vmem:[#allocation2 + $0x1c] sm:$0xf] %v645
    %678 = vst [vmem:[#allocation2 + $0x20] sm:$0xf] %v646
    %679 = vst [vmem:[#allocation2 + $0x24] sm:$0xf] %v647
    %680 = vst [vmem:[#allocation2 + $0x28] sm:$0xf] %v648
    %681 = vst [vmem:[#allocation2 + $0x2c] sm:$0xf] %v649
    %682 = vst [vmem:[#allocation2 + $0x30] sm:$0xf] %v650
    %683 = vst [vmem:[#allocation2 + $0x34] sm:$0xf] %v651
    %684 = vst [vmem:[#allocation2 + $0x38] sm:$0xf] %v652
    %685 = vst [vmem:[#allocation2 + $0x3c] sm:$0xf] %v653
    %686 = vst [vmem:[#allocation2 + $0x40] sm:$0xf] %v654
    %687 = vst [vmem:[#allocation2 + $0x44] sm:$0xf] %v655
    %688 = vst [vmem:[#allocation2 + $0x48] sm:$0xf] %v656
    %689 = vst [vmem:[#allocation2 + $0x4c] sm:$0xf] %v657
    %690 = vst [vmem:[#allocation2 + $0x50] sm:$0xf] %v658
    %691 = vst [vmem:[#allocation2 + $0x54] sm:$0xf] %v659
    %692 = vst [vmem:[#allocation2 + $0x58] sm:$0xf] %v660
    %693 = vst [vmem:[#allocation2 + $0x5c] sm:$0xf] %v661
    %694 = vst [vmem:[#allocation2 + $0x60] sm:$0xf] %v662
    %695 = vst [vmem:[#allocation2 + $0x64] sm:$0xf] %v663
    %696 = vst [vmem:[#allocation2 + $0x68] sm:$0xf] %v664
    %697 = vst [vmem:[#allocation2 + $0x6c] sm:$0xf] %v665
    %698 = vst [vmem:[#allocation2 + $0x70] sm:$0xf] %v666
    %699 = vst [vmem:[#allocation2 + $0x74] sm:$0xf] %v667
    %700 = vst [vmem:[#allocation2 + $0x78] sm:$0xf] %v668
    %701 = vst [vmem:[#allocation2 + $0x7c] sm:$0xf] %v669
    %v702 = vld [vmem:[#allocation3] sm:$0xff]
    %v703 = vld [vmem:[#allocation3 + $0x8] sm:$0xff]
    %v704 = vld [vmem:[#allocation3 + $0x10] sm:$0xff]
    %v705 = vld [vmem:[#allocation3 + $0x18] sm:$0xff]
    %v706 = vld [vmem:[#allocation3 + $0x20] sm:$0xff]
    %v707 = vld [vmem:[#allocation3 + $0x28] sm:$0xff]
    %v708 = vld [vmem:[#allocation3 + $0x30] sm:$0xff]
    %v709 = vld [vmem:[#allocation3 + $0x38] sm:$0xff]
    %v710 = vld [vmem:[#allocation3 + $0x40] sm:$0xff]
    %v711 = vld [vmem:[#allocation3 + $0x48] sm:$0xff]
    %v712 = vld [vmem:[#allocation3 + $0x50] sm:$0xff]
    %v713 = vld [vmem:[#allocation3 + $0x58] sm:$0xff]
    %v714 = vld [vmem:[#allocation3 + $0x60] sm:$0xff]
    %v715 = vld [vmem:[#allocation3 + $0x68] sm:$0xff]
    %v716 = vld [vmem:[#allocation3 + $0x70] sm:$0xff]
    %v717 = vld [vmem:[#allocation3 + $0x78] sm:$0xff]
    %v718 = vld [vmem:[#allocation3 + $0x80] sm:$0xff]
    %v719 = vld [vmem:[#allocation3 + $0x88] sm:$0xff]
    %v720 = vld [vmem:[#allocation3 + $0x90] sm:$0xff]
    %v721 = vld [vmem:[#allocation3 + $0x98] sm:$0xff]
    %v722 = vld [vmem:[#allocation3 + $0xa0] sm:$0xff]
    %v723 = vld [vmem:[#allocation3 + $0xa8] sm:$0xff]
    %v724 = vld [vmem:[#allocation3 + $0xb0] sm:$0xff]
    %v725 = vld [vmem:[#allocation3 + $0xb8] sm:$0xff]
    %v726 = vld [vmem:[#allocation3 + $0xc0] sm:$0xff]
    %v727 = vld [vmem:[#allocation3 + $0xc8] sm:$0xff]
    %v728 = vld [vmem:[#allocation3 + $0xd0] sm:$0xff]
    %v729 = vld [vmem:[#allocation3 + $0xd8] sm:$0xff]
    %v730 = vld [vmem:[#allocation3 + $0xe0] sm:$0xff]
    %v731 = vld [vmem:[#allocation3 + $0xe8] sm:$0xff]
    %v732 = vld [vmem:[#allocation3 + $0xf0] sm:$0xff]
    %v733 = vld [vmem:[#allocation3 + $0xf8] sm:$0xff]
    %v734 = vadd.f32 %v702, %v559
    %v735 = vadd.f32 %v703, %v561
    %v736 = vadd.f32 %v704, %v564
    %v737 = vadd.f32 %v705, %v566
    %v738 = vadd.f32 %v706, %v569
    %v739 = vadd.f32 %v707, %v571
    %v740 = vadd.f32 %v708, %v574
    %v741 = vadd.f32 %v709, %v576
    %v742 = vadd.f32 %v710, %v579
    %v743 = vadd.f32 %v711, %v581
    %v744 = vadd.f32 %v712, %v584
    %v745 = vadd.f32 %v713, %v586
    %v746 = vadd.f32 %v714, %v589
    %v747 = vadd.f32 %v715, %v591
    %v748 = vadd.f32 %v716, %v594
    %v749 = vadd.f32 %v717, %v596
    %v750 = vadd.f32 %v718, %v599
    %v751 = vadd.f32 %v719, %v601
    %v752 = vadd.f32 %v720, %v604
    %v753 = vadd.f32 %v721, %v606
    %v754 = vadd.f32 %v722, %v609
    %v755 = vadd.f32 %v723, %v611
    %v756 = vadd.f32 %v724, %v614
    %v757 = vadd.f32 %v725, %v616
    %v758 = vadd.f32 %v726, %v619
    %v759 = vadd.f32 %v727, %v621
    %v760 = vadd.f32 %v728, %v624
    %v761 = vadd.f32 %v729, %v626
    %v762 = vadd.f32 %v730, %v629
    %v763 = vadd.f32 %v731, %v631
    %v764 = vadd.f32 %v732, %v634
    %v765 = vadd.f32 %v733, %v636
    %766 = vst [vmem:[#allocation3] sm:$0xff] %v734
    %767 = vst [vmem:[#allocation3 + $0x8] sm:$0xff] %v735
    %768 = vst [vmem:[#allocation3 + $0x10] sm:$0xff] %v736
    %769 = vst [vmem:[#allocation3 + $0x18] sm:$0xff] %v737
    %770 = vst [vmem:[#allocation3 + $0x20] sm:$0xff] %v738
    %771 = vst [vmem:[#allocation3 + $0x28] sm:$0xff] %v739
    %772 = vst [vmem:[#allocation3 + $0x30] sm:$0xff] %v740
    %773 = vst [vmem:[#allocation3 + $0x38] sm:$0xff] %v741
    %774 = vst [vmem:[#allocation3 + $0x40] sm:$0xff] %v742
    %775 = vst [vmem:[#allocation3 + $0x48] sm:$0xff] %v743
    %776 = vst [vmem:[#allocation3 + $0x50] sm:$0xff] %v744
    %777 = vst [vmem:[#allocation3 + $0x58] sm:$0xff] %v745
    %778 = vst [vmem:[#allocation3 + $0x60] sm:$0xff] %v746
    %779 = vst [vmem:[#allocation3 + $0x68] sm:$0xff] %v747
    %780 = vst [vmem:[#allocation3 + $0x70] sm:$0xff] %v748
    %781 = vst [vmem:[#allocation3 + $0x78] sm:$0xff] %v749
    %782 = vst [vmem:[#allocation3 + $0x80] sm:$0xff] %v750
    %783 = vst [vmem:[#allocation3 + $0x88] sm:$0xff] %v751
    %784 = vst [vmem:[#allocation3 + $0x90] sm:$0xff] %v752
    %785 = vst [vmem:[#allocation3 + $0x98] sm:$0xff] %v753
    %786 = vst [vmem:[#allocation3 + $0xa0] sm:$0xff] %v754
    %787 = vst [vmem:[#allocation3 + $0xa8] sm:$0xff] %v755
    %788 = vst [vmem:[#allocation3 + $0xb0] sm:$0xff] %v756
    %789 = vst [vmem:[#allocation3 + $0xb8] sm:$0xff] %v757
    %790 = vst [vmem:[#allocation3 + $0xc0] sm:$0xff] %v758
    %791 = vst [vmem:[#allocation3 + $0xc8] sm:$0xff] %v759
    %792 = vst [vmem:[#allocation3 + $0xd0] sm:$0xff] %v760
    %793 = vst [vmem:[#allocation3 + $0xd8] sm:$0xff] %v761
    %794 = vst [vmem:[#allocation3 + $0xe0] sm:$0xff] %v762
    %795 = vst [vmem:[#allocation3 + $0xe8] sm:$0xff] %v763
    %796 = vst [vmem:[#allocation3 + $0xf0] sm:$0xff] %v764
    %797 = vst [vmem:[#allocation3 + $0xf8] sm:$0xff] %v765
    %v798 = vld [vmem:[%s0] sm:$0xff]
    %v799 = vld [vmem:[%s0 + $0x8] sm:$0xff]
    %v800 = vld [vmem:[%s0 + $0x10] sm:$0xff]
    %v801 = vld [vmem:[%s0 + $0x18] sm:$0xff]
    %v802 = vld [vmem:[%s0 + $0x20] sm:$0xff]
    %v803 = vld [vmem:[%s0 + $0x28] sm:$0xff]
    %v804 = vld [vmem:[%s0 + $0x30] sm:$0xff]
    %v805 = vld [vmem:[%s0 + $0x38] sm:$0xff]
    %v806 = vld [vmem:[%s0 + $0x40] sm:$0xff]
    %v807 = vld [vmem:[%s0 + $0x48] sm:$0xff]
    %v808 = vld [vmem:[%s0 + $0x50] sm:$0xff]
    %v809 = vld [vmem:[%s0 + $0x58] sm:$0xff]
    %v810 = vld [vmem:[%s0 + $0x60] sm:$0xff]
    %v811 = vld [vmem:[%s0 + $0x68] sm:$0xff]
    %v812 = vld [vmem:[%s0 + $0x70] sm:$0xff]
    %v813 = vld [vmem:[%s0 + $0x78] sm:$0xff]
    %v814 = vld [vmem:[%s0 + $0x80] sm:$0xff]
    %v815 = vld [vmem:[%s0 + $0x88] sm:$0xff]
    %v816 = vld [vmem:[%s0 + $0x90] sm:$0xff]
    %v817 = vld [vmem:[%s0 + $0x98] sm:$0xff]
    %v818 = vld [vmem:[%s0 + $0xa0] sm:$0xff]
    %v819 = vld [vmem:[%s0 + $0xa8] sm:$0xff]
    %v820 = vld [vmem:[%s0 + $0xb0] sm:$0xff]
    %v821 = vld [vmem:[%s0 + $0xb8] sm:$0xff]
    %v822 = vld [vmem:[%s0 + $0xc0] sm:$0xff]
    %v823 = vld [vmem:[%s0 + $0xc8] sm:$0xff]
    %v824 = vld [vmem:[%s0 + $0xd0] sm:$0xff]
    %v825 = vld [vmem:[%s0 + $0xd8] sm:$0xff]
    %v826 = vld [vmem:[%s0 + $0xe0] sm:$0xff]
    %v827 = vld [vmem:[%s0 + $0xe8] sm:$0xff]
    %v828 = vld [vmem:[%s0 + $0xf0] sm:$0xff]
    %v829 = vld [vmem:[%s0 + $0xf8] sm:$0xff]
    %v830 = vld [vmem:[#allocation2] sm:$0xf]
    %v831 = vld [vmem:[#allocation2 + $0x4] sm:$0xf]
    %v832 = vld [vmem:[#allocation2 + $0x8] sm:$0xf]
    %v833 = vld [vmem:[#allocation2 + $0xc] sm:$0xf]
    %v834 = vld [vmem:[#allocation2 + $0x10] sm:$0xf]
    %v835 = vld [vmem:[#allocation2 + $0x14] sm:$0xf]
    %v836 = vld [vmem:[#allocation2 + $0x18] sm:$0xf]
    %v837 = vld [vmem:[#allocation2 + $0x1c] sm:$0xf]
    %v838 = vld [vmem:[#allocation2 + $0x20] sm:$0xf]
    %v839 = vld [vmem:[#allocation2 + $0x24] sm:$0xf]
    %v840 = vld [vmem:[#allocation2 + $0x28] sm:$0xf]
    %v841 = vld [vmem:[#allocation2 + $0x2c] sm:$0xf]
    %v842 = vld [vmem:[#allocation2 + $0x30] sm:$0xf]
    %v843 = vld [vmem:[#allocation2 + $0x34] sm:$0xf]
    %v844 = vld [vmem:[#allocation2 + $0x38] sm:$0xf]
    %v845 = vld [vmem:[#allocation2 + $0x3c] sm:$0xf]
    %v846 = vld [vmem:[#allocation2 + $0x40] sm:$0xf]
    %v847 = vld [vmem:[#allocation2 + $0x44] sm:$0xf]
    %v848 = vld [vmem:[#allocation2 + $0x48] sm:$0xf]
    %v849 = vld [vmem:[#allocation2 + $0x4c] sm:$0xf]
    %v850 = vld [vmem:[#allocation2 + $0x50] sm:$0xf]
    %v851 = vld [vmem:[#allocation2 + $0x54] sm:$0xf]
    %v852 = vld [vmem:[#allocation2 + $0x58] sm:$0xf]
    %v853 = vld [vmem:[#allocation2 + $0x5c] sm:$0xf]
    %v854 = vld [vmem:[#allocation2 + $0x60] sm:$0xf]
    %v855 = vld [vmem:[#allocation2 + $0x64] sm:$0xf]
    %v856 = vld [vmem:[#allocation2 + $0x68] sm:$0xf]
    %v857 = vld [vmem:[#allocation2 + $0x6c] sm:$0xf]
    %v858 = vld [vmem:[#allocation2 + $0x70] sm:$0xf]
    %v859 = vld [vmem:[#allocation2 + $0x74] sm:$0xf]
    %v860 = vld [vmem:[#allocation2 + $0x78] sm:$0xf]
    %v861 = vld [vmem:[#allocation2 + $0x7c] sm:$0xf]
    %v894 = vunpack.c.l.b16 %v798
    %v895 = vunpack.c.h.b16 %v798
    %v896 = vunpack.c.l.b16 %v799
    %v897 = vunpack.c.h.b16 %v799
    %v898 = vunpack.c.l.b16 %v800
    %v899 = vunpack.c.h.b16 %v800
    %v900 = vunpack.c.l.b16 %v801
    %v901 = vunpack.c.h.b16 %v801
    %v902 = vunpack.c.l.b16 %v802
    %v903 = vunpack.c.h.b16 %v802
    %v904 = vunpack.c.l.b16 %v803
    %v905 = vunpack.c.h.b16 %v803
    %v906 = vunpack.c.l.b16 %v804
    %v907 = vunpack.c.h.b16 %v804
    %v908 = vunpack.c.l.b16 %v805
    %v909 = vunpack.c.h.b16 %v805
    %v910 = vunpack.c.l.b16 %v806
    %v911 = vunpack.c.h.b16 %v806
    %v912 = vunpack.c.l.b16 %v807
    %v913 = vunpack.c.h.b16 %v807
    %v914 = vunpack.c.l.b16 %v808
    %v915 = vunpack.c.h.b16 %v808
    %v916 = vunpack.c.l.b16 %v809
    %v917 = vunpack.c.h.b16 %v809
    %v918 = vunpack.c.l.b16 %v810
    %v919 = vunpack.c.h.b16 %v810
    %v920 = vunpack.c.l.b16 %v811
    %v921 = vunpack.c.h.b16 %v811
    %v922 = vunpack.c.l.b16 %v812
    %v923 = vunpack.c.h.b16 %v812
    %v924 = vunpack.c.l.b16 %v813
    %v925 = vunpack.c.h.b16 %v813
    %v926 = vunpack.c.l.b16 %v814
    %v927 = vunpack.c.h.b16 %v814
    %v928 = vunpack.c.l.b16 %v815
    %v929 = vunpack.c.h.b16 %v815
    %v930 = vunpack.c.l.b16 %v816
    %v931 = vunpack.c.h.b16 %v816
    %v932 = vunpack.c.l.b16 %v817
    %v933 = vunpack.c.h.b16 %v817
    %v934 = vunpack.c.l.b16 %v818
    %v935 = vunpack.c.h.b16 %v818
    %v936 = vunpack.c.l.b16 %v819
    %v937 = vunpack.c.h.b16 %v819
    %v938 = vunpack.c.l.b16 %v820
    %v939 = vunpack.c.h.b16 %v820
    %v940 = vunpack.c.l.b16 %v821
    %v941 = vunpack.c.h.b16 %v821
    %v942 = vunpack.c.l.b16 %v822
    %v943 = vunpack.c.h.b16 %v822
    %v944 = vunpack.c.l.b16 %v823
    %v945 = vunpack.c.h.b16 %v823
    %v946 = vunpack.c.l.b16 %v824
    %v947 = vunpack.c.h.b16 %v824
    %v948 = vunpack.c.l.b16 %v825
    %v949 = vunpack.c.h.b16 %v825
    %v950 = vunpack.c.l.b16 %v826
    %v951 = vunpack.c.h.b16 %v826
    %v952 = vunpack.c.l.b16 %v827
    %v953 = vunpack.c.h.b16 %v827
    %v954 = vunpack.c.l.b16 %v828
    %v955 = vunpack.c.h.b16 %v828
    %v956 = vunpack.c.l.b16 %v829
    %v957 = vunpack.c.h.b16 %v829
    %v958 = vpack.c.b16 %v896, %v894
    %v959 = vpack.c.b16 %v897, %v895
    %v960 = vpack.c.b16 %v900, %v898
    %v961 = vpack.c.b16 %v901, %v899
    %v962 = vpack.c.b16 %v904, %v902
    %v963 = vpack.c.b16 %v905, %v903
    %v964 = vpack.c.b16 %v908, %v906
    %v965 = vpack.c.b16 %v909, %v907
    %v966 = vpack.c.b16 %v912, %v910
    %v967 = vpack.c.b16 %v913, %v911
    %v968 = vpack.c.b16 %v916, %v914
    %v969 = vpack.c.b16 %v917, %v915
    %v970 = vpack.c.b16 %v920, %v918
    %v971 = vpack.c.b16 %v921, %v919
    %v972 = vpack.c.b16 %v924, %v922
    %v973 = vpack.c.b16 %v925, %v923
    %v974 = vpack.c.b16 %v928, %v926
    %v975 = vpack.c.b16 %v929, %v927
    %v976 = vpack.c.b16 %v932, %v930
    %v977 = vpack.c.b16 %v933, %v931
    %v978 = vpack.c.b16 %v936, %v934
    %v979 = vpack.c.b16 %v937, %v935
    %v980 = vpack.c.b16 %v940, %v938
    %v981 = vpack.c.b16 %v941, %v939
    %v982 = vpack.c.b16 %v944, %v942
    %v983 = vpack.c.b16 %v945, %v943
    %v984 = vpack.c.b16 %v948, %v946
    %v985 = vpack.c.b16 %v949, %v947
    %v986 = vpack.c.b16 %v952, %v950
    %v987 = vpack.c.b16 %v953, %v951
    %v988 = vpack.c.b16 %v956, %v954
    %v989 = vpack.c.b16 %v957, %v955
    %v1054 = vunpack.c.l.b16 %v830
    %v1055 = vunpack.c.l.b16 %v831
    %v1056 = vunpack.c.l.b16 %v832
    %v1057 = vunpack.c.l.b16 %v833
    %v1058 = vunpack.c.l.b16 %v834
    %v1059 = vunpack.c.l.b16 %v835
    %v1060 = vunpack.c.l.b16 %v836
    %v1061 = vunpack.c.l.b16 %v837
    %v1062 = vunpack.c.l.b16 %v838
    %v1063 = vunpack.c.l.b16 %v839
    %v1064 = vunpack.c.l.b16 %v840
    %v1065 = vunpack.c.l.b16 %v841
    %v1066 = vunpack.c.l.b16 %v842
    %v1067 = vunpack.c.l.b16 %v843
    %v1068 = vunpack.c.l.b16 %v844
    %v1069 = vunpack.c.l.b16 %v845
    %v1070 = vunpack.c.l.b16 %v846
    %v1071 = vunpack.c.l.b16 %v847
    %v1072 = vunpack.c.l.b16 %v848
    %v1073 = vunpack.c.l.b16 %v849
    %v1074 = vunpack.c.l.b16 %v850
    %v1075 = vunpack.c.l.b16 %v851
    %v1076 = vunpack.c.l.b16 %v852
    %v1077 = vunpack.c.l.b16 %v853
    %v1078 = vunpack.c.l.b16 %v854
    %v1079 = vunpack.c.l.b16 %v855
    %v1080 = vunpack.c.l.b16 %v856
    %v1081 = vunpack.c.l.b16 %v857
    %v1082 = vunpack.c.l.b16 %v858
    %v1083 = vunpack.c.l.b16 %v859
    %v1084 = vunpack.c.l.b16 %v860
    %v1085 = vunpack.c.l.b16 %v861
    %v1086 = vpack.c.b16 %v1055, %v1054
    %v1087 = vpack.c.b16 %v1057, %v1056
    %v1088 = vpack.c.b16 %v1059, %v1058
    %v1089 = vpack.c.b16 %v1061, %v1060
    %v1090 = vpack.c.b16 %v1063, %v1062
    %v1091 = vpack.c.b16 %v1065, %v1064
    %v1092 = vpack.c.b16 %v1067, %v1066
    %v1093 = vpack.c.b16 %v1069, %v1068
    %v1094 = vpack.c.b16 %v1071, %v1070
    %v1095 = vpack.c.b16 %v1073, %v1072
    %v1096 = vpack.c.b16 %v1075, %v1074
    %v1097 = vpack.c.b16 %v1077, %v1076
    %v1098 = vpack.c.b16 %v1079, %v1078
    %v1099 = vpack.c.b16 %v1081, %v1080
    %v1100 = vpack.c.b16 %v1083, %v1082
    %v1101 = vpack.c.b16 %v1085, %v1084
    %1118 = vmatpush.bf16.msra.mxu0 %v1093
    %1119 = vmatpush.bf16.msra.mxu0 %v1092
    %1120 = vmatpush.bf16.msra.mxu0 %v1091
    %1121 = vmatpush.bf16.msra.mxu0 %v1090
    %1122 = vmatpush.bf16.msra.mxu0 %v1089
    %1123 = vmatpush.bf16.msra.mxu0 %v1088
    %1124 = vmatpush.bf16.msra.mxu0 %v1087
    %1125 = vmatpush.bf16.msra.mxu0 %v1086
    %1126 = vmatmul.bf16.gmra.mxu0 %v958
    %v1127 = vpop.f32.mrf.mxu0
    %v1128 = vadd.f32 0.0, %v1127
    %v1129 = vpop.f32.mrf.mxu0
    %v1130 = vadd.f32 0.0, %v1129
    %1131 = vmatmul.bf16.gmra.mxu0 %v960
    %v1132 = vpop.f32.mrf.mxu0
    %v1133 = vadd.f32 0.0, %v1132
    %v1134 = vpop.f32.mrf.mxu0
    %v1135 = vadd.f32 0.0, %v1134
    %1136 = vmatmul.bf16.gmra.mxu0 %v962
    %v1137 = vpop.f32.mrf.mxu0
    %v1138 = vadd.f32 0.0, %v1137
    %v1139 = vpop.f32.mrf.mxu0
    %v1140 = vadd.f32 0.0, %v1139
    %1141 = vmatmul.bf16.gmra.mxu0 %v964
    %v1142 = vpop.f32.mrf.mxu0
    %v1143 = vadd.f32 0.0, %v1142
    %v1144 = vpop.f32.mrf.mxu0
    %v1145 = vadd.f32 0.0, %v1144
    %1146 = vmatmul.bf16.gmra.mxu0 %v966
    %v1147 = vpop.f32.mrf.mxu0
    %v1148 = vadd.f32 0.0, %v1147
    %v1149 = vpop.f32.mrf.mxu0
    %v1150 = vadd.f32 0.0, %v1149
    %1151 = vmatmul.bf16.gmra.mxu0 %v968
    %v1152 = vpop.f32.mrf.mxu0
    %v1153 = vadd.f32 0.0, %v1152
    %v1154 = vpop.f32.mrf.mxu0
    %v1155 = vadd.f32 0.0, %v1154
    %1156 = vmatmul.bf16.gmra.mxu0 %v970
    %v1157 = vpop.f32.mrf.mxu0
    %v1158 = vadd.f32 0.0, %v1157
    %v1159 = vpop.f32.mrf.mxu0
    %v1160 = vadd.f32 0.0, %v1159
    %1161 = vmatmul.bf16.gmra.mxu0 %v972
    %v1162 = vpop.f32.mrf.mxu0
    %v1163 = vadd.f32 0.0, %v1162
    %v1164 = vpop.f32.mrf.mxu0
    %v1165 = vadd.f32 0.0, %v1164
    %1166 = vmatmul.bf16.gmra.mxu0 %v974
    %v1167 = vpop.f32.mrf.mxu0
    %v1168 = vadd.f32 0.0, %v1167
    %v1169 = vpop.f32.mrf.mxu0
    %v1170 = vadd.f32 0.0, %v1169
    %1171 = vmatmul.bf16.gmra.mxu0 %v976
    %v1172 = vpop.f32.mrf.mxu0
    %v1173 = vadd.f32 0.0, %v1172
    %v1174 = vpop.f32.mrf.mxu0
    %v1175 = vadd.f32 0.0, %v1174
    %1176 = vmatmul.bf16.gmra.mxu0 %v978
    %v1177 = vpop.f32.mrf.mxu0
    %v1178 = vadd.f32 0.0, %v1177
    %v1179 = vpop.f32.mrf.mxu0
    %v1180 = vadd.f32 0.0, %v1179
    %1181 = vmatmul.bf16.gmra.mxu0 %v980
    %v1182 = vpop.f32.mrf.mxu0
    %v1183 = vadd.f32 0.0, %v1182
    %v1184 = vpop.f32.mrf.mxu0
    %v1185 = vadd.f32 0.0, %v1184
    %1186 = vmatmul.bf16.gmra.mxu0 %v982
    %v1187 = vpop.f32.mrf.mxu0
    %v1188 = vadd.f32 0.0, %v1187
    %v1189 = vpop.f32.mrf.mxu0
    %v1190 = vadd.f32 0.0, %v1189
    %1191 = vmatmul.bf16.gmra.mxu0 %v984
    %v1192 = vpop.f32.mrf.mxu0
    %v1193 = vadd.f32 0.0, %v1192
    %v1194 = vpop.f32.mrf.mxu0
    %v1195 = vadd.f32 0.0, %v1194
    %1196 = vmatmul.bf16.gmra.mxu0 %v986
    %v1197 = vpop.f32.mrf.mxu0
    %v1198 = vadd.f32 0.0, %v1197
    %v1199 = vpop.f32.mrf.mxu0
    %v1200 = vadd.f32 0.0, %v1199
    %1201 = vmatmul.bf16.gmra.mxu0 %v988
    %v1202 = vpop.f32.mrf.mxu0
    %v1203 = vadd.f32 0.0, %v1202
    %v1204 = vpop.f32.mrf.mxu0
    %v1205 = vadd.f32 0.0, %v1204
    %1206 = vdwg.mxu0
    %1207 = vmatpush.bf16.msra.mxu0 %v1101
    %1208 = vmatpush.bf16.msra.mxu0 %v1100
    %1209 = vmatpush.bf16.msra.mxu0 %v1099
    %1210 = vmatpush.bf16.msra.mxu0 %v1098
    %1211 = vmatpush.bf16.msra.mxu0 %v1097
    %1212 = vmatpush.bf16.msra.mxu0 %v1096
    %1213 = vmatpush.bf16.msra.mxu0 %v1095
    %1214 = vmatpush.bf16.msra.mxu0 %v1094
    %1215 = vmatmul.bf16.gmra.mxu0 %v959
    %v1216 = vpop.f32.mrf.mxu0
    %v1217 = vadd.f32 %v1128, %v1216
    %v1218 = vpop.f32.mrf.mxu0
    %v1219 = vadd.f32 %v1130, %v1218
    %1220 = vmatmul.bf16.gmra.mxu0 %v961
    %v1221 = vpop.f32.mrf.mxu0
    %v1222 = vadd.f32 %v1133, %v1221
    %v1223 = vpop.f32.mrf.mxu0
    %v1224 = vadd.f32 %v1135, %v1223
    %1225 = vmatmul.bf16.gmra.mxu0 %v963
    %v1226 = vpop.f32.mrf.mxu0
    %v1227 = vadd.f32 %v1138, %v1226
    %v1228 = vpop.f32.mrf.mxu0
    %v1229 = vadd.f32 %v1140, %v1228
    %1230 = vmatmul.bf16.gmra.mxu0 %v965
    %v1231 = vpop.f32.mrf.mxu0
    %v1232 = vadd.f32 %v1143, %v1231
    %v1233 = vpop.f32.mrf.mxu0
    %v1234 = vadd.f32 %v1145, %v1233
    %1235 = vmatmul.bf16.gmra.mxu0 %v967
    %v1236 = vpop.f32.mrf.mxu0
    %v1237 = vadd.f32 %v1148, %v1236
    %v1238 = vpop.f32.mrf.mxu0
    %v1239 = vadd.f32 %v1150, %v1238
    %1240 = vmatmul.bf16.gmra.mxu0 %v969
    %v1241 = vpop.f32.mrf.mxu0
    %v1242 = vadd.f32 %v1153, %v1241
    %v1243 = vpop.f32.mrf.mxu0
    %v1244 = vadd.f32 %v1155, %v1243
    %1245 = vmatmul.bf16.gmra.mxu0 %v971
    %v1246 = vpop.f32.mrf.mxu0
    %v1247 = vadd.f32 %v1158, %v1246
    %v1248 = vpop.f32.mrf.mxu0
    %v1249 = vadd.f32 %v1160, %v1248
    %1250 = vmatmul.bf16.gmra.mxu0 %v973
    %v1251 = vpop.f32.mrf.mxu0
    %v1252 = vadd.f32 %v1163, %v1251
    %v1253 = vpop.f32.mrf.mxu0
    %v1254 = vadd.f32 %v1165, %v1253
    %1255 = vmatmul.bf16.gmra.mxu0 %v975
    %v1256 = vpop.f32.mrf.mxu0
    %v1257 = vadd.f32 %v1168, %v1256
    %v1258 = vpop.f32.mrf.mxu0
    %v1259 = vadd.f32 %v1170, %v1258
    %1260 = vmatmul.bf16.gmra.mxu0 %v977
    %v1261 = vpop.f32.mrf.mxu0
    %v1262 = vadd.f32 %v1173, %v1261
    %v1263 = vpop.f32.mrf.mxu0
    %v1264 = vadd.f32 %v1175, %v1263
    %1265 = vmatmul.bf16.gmra.mxu0 %v979
    %v1266 = vpop.f32.mrf.mxu0
    %v1267 = vadd.f32 %v1178, %v1266
    %v1268 = vpop.f32.mrf.mxu0
    %v1269 = vadd.f32 %v1180, %v1268
    %1270 = vmatmul.bf16.gmra.mxu0 %v981
    %v1271 = vpop.f32.mrf.mxu0
    %v1272 = vadd.f32 %v1183, %v1271
    %v1273 = vpop.f32.mrf.mxu0
    %v1274 = vadd.f32 %v1185, %v1273
    %1275 = vmatmul.bf16.gmra.mxu0 %v983
    %v1276 = vpop.f32.mrf.mxu0
    %v1277 = vadd.f32 %v1188, %v1276
    %v1278 = vpop.f32.mrf.mxu0
    %v1279 = vadd.f32 %v1190, %v1278
    %1280 = vmatmul.bf16.gmra.mxu0 %v985
    %v1281 = vpop.f32.mrf.mxu0
    %v1282 = vadd.f32 %v1193, %v1281
    %v1283 = vpop.f32.mrf.mxu0
    %v1284 = vadd.f32 %v1195, %v1283
    %1285 = vmatmul.bf16.gmra.mxu0 %v987
    %v1286 = vpop.f32.mrf.mxu0
    %v1287 = vadd.f32 %v1198, %v1286
    %v1288 = vpop.f32.mrf.mxu0
    %v1289 = vadd.f32 %v1200, %v1288
    %1290 = vmatmul.bf16.gmra.mxu0 %v989
    %v1291 = vpop.f32.mrf.mxu0
    %v1292 = vadd.f32 %v1203, %v1291
    %v1293 = vpop.f32.mrf.mxu0
    %v1294 = vadd.f32 %v1205, %v1293
    %1295 = vdwg.mxu0
    %v1296 = vpack.c.bf16 %v1217, %v1217
    %v1297 = vpack.c.bf16 %v1219, %v1219
    %v1298 = vpack.c.bf16 %v1222, %v1222
    %v1299 = vpack.c.bf16 %v1224, %v1224
    %v1300 = vpack.c.bf16 %v1227, %v1227
    %v1301 = vpack.c.bf16 %v1229, %v1229
    %v1302 = vpack.c.bf16 %v1232, %v1232
    %v1303 = vpack.c.bf16 %v1234, %v1234
    %v1304 = vpack.c.bf16 %v1237, %v1237
    %v1305 = vpack.c.bf16 %v1239, %v1239
    %v1306 = vpack.c.bf16 %v1242, %v1242
    %v1307 = vpack.c.bf16 %v1244, %v1244
    %v1308 = vpack.c.bf16 %v1247, %v1247
    %v1309 = vpack.c.bf16 %v1249, %v1249
    %v1310 = vpack.c.bf16 %v1252, %v1252
    %v1311 = vpack.c.bf16 %v1254, %v1254
    %v1312 = vpack.c.bf16 %v1257, %v1257
    %v1313 = vpack.c.bf16 %v1259, %v1259
    %v1314 = vpack.c.bf16 %v1262, %v1262
    %v1315 = vpack.c.bf16 %v1264, %v1264
    %v1316 = vpack.c.bf16 %v1267, %v1267
    %v1317 = vpack.c.bf16 %v1269, %v1269
    %v1318 = vpack.c.bf16 %v1272, %v1272
    %v1319 = vpack.c.bf16 %v1274, %v1274
    %v1320 = vpack.c.bf16 %v1277, %v1277
    %v1321 = vpack.c.bf16 %v1279, %v1279
    %v1322 = vpack.c.bf16 %v1282, %v1282
    %v1323 = vpack.c.bf16 %v1284, %v1284
    %v1324 = vpack.c.bf16 %v1287, %v1287
    %v1325 = vpack.c.bf16 %v1289, %v1289
    %v1326 = vpack.c.bf16 %v1292, %v1292
    %v1327 = vpack.c.bf16 %v1294, %v1294
    %1328 = vst [vmem:[#allocation2] sm:$0xf] %v1296
    %1329 = vst [vmem:[#allocation2 + $0x4] sm:$0xf] %v1297
    %1330 = vst [vmem:[#allocation2 + $0x8] sm:$0xf] %v1298
    %1331 = vst [vmem:[#allocation2 + $0xc] sm:$0xf] %v1299
    %1332 = vst [vmem:[#allocation2 + $0x10] sm:$0xf] %v1300
    %1333 = vst [vmem:[#allocation2 + $0x14] sm:$0xf] %v1301
    %1334 = vst [vmem:[#allocation2 + $0x18] sm:$0xf] %v1302
    %1335 = vst [vmem:[#allocation2 + $0x1c] sm:$0xf] %v1303
    %1336 = vst [vmem:[#allocation2 + $0x20] sm:$0xf] %v1304
    %1337 = vst [vmem:[#allocation2 + $0x24] sm:$0xf] %v1305
    %1338 = vst [vmem:[#allocation2 + $0x28] sm:$0xf] %v1306
    %1339 = vst [vmem:[#allocation2 + $0x2c] sm:$0xf] %v1307
    %1340 = vst [vmem:[#allocation2 + $0x30] sm:$0xf] %v1308
    %1341 = vst [vmem:[#allocation2 + $0x34] sm:$0xf] %v1309
    %1342 = vst [vmem:[#allocation2 + $0x38] sm:$0xf] %v1310
    %1343 = vst [vmem:[#allocation2 + $0x3c] sm:$0xf] %v1311
    %1344 = vst [vmem:[#allocation2 + $0x40] sm:$0xf] %v1312
    %1345 = vst [vmem:[#allocation2 + $0x44] sm:$0xf] %v1313
    %1346 = vst [vmem:[#allocation2 + $0x48] sm:$0xf] %v1314
    %1347 = vst [vmem:[#allocation2 + $0x4c] sm:$0xf] %v1315
    %1348 = vst [vmem:[#allocation2 + $0x50] sm:$0xf] %v1316
    %1349 = vst [vmem:[#allocation2 + $0x54] sm:$0xf] %v1317
    %1350 = vst [vmem:[#allocation2 + $0x58] sm:$0xf] %v1318
    %1351 = vst [vmem:[#allocation2 + $0x5c] sm:$0xf] %v1319
    %1352 = vst [vmem:[#allocation2 + $0x60] sm:$0xf] %v1320
    %1353 = vst [vmem:[#allocation2 + $0x64] sm:$0xf] %v1321
    %1354 = vst [vmem:[#allocation2 + $0x68] sm:$0xf] %v1322
    %1355 = vst [vmem:[#allocation2 + $0x6c] sm:$0xf] %v1323
    %1356 = vst [vmem:[#allocation2 + $0x70] sm:$0xf] %v1324
    %1357 = vst [vmem:[#allocation2 + $0x74] sm:$0xf] %v1325
    %1358 = vst [vmem:[#allocation2 + $0x78] sm:$0xf] %v1326
    %1359 = vst [vmem:[#allocation2 + $0x7c] sm:$0xf] %v1327
    %v1360 = vld [vmem:[#allocation3] sm:$0xff]
    %v1361 = vld [vmem:[#allocation3 + $0x8] sm:$0xff]
    %v1362 = vld [vmem:[#allocation3 + $0x10] sm:$0xff]
    %v1363 = vld [vmem:[#allocation3 + $0x18] sm:$0xff]
    %v1364 = vld [vmem:[#allocation3 + $0x20] sm:$0xff]
    %v1365 = vld [vmem:[#allocation3 + $0x28] sm:$0xff]
    %v1366 = vld [vmem:[#allocation3 + $0x30] sm:$0xff]
    %v1367 = vld [vmem:[#allocation3 + $0x38] sm:$0xff]
    %v1368 = vld [vmem:[#allocation3 + $0x40] sm:$0xff]
    %v1369 = vld [vmem:[#allocation3 + $0x48] sm:$0xff]
    %v1370 = vld [vmem:[#allocation3 + $0x50] sm:$0xff]
    %v1371 = vld [vmem:[#allocation3 + $0x58] sm:$0xff]
    %v1372 = vld [vmem:[#allocation3 + $0x60] sm:$0xff]
    %v1373 = vld [vmem:[#allocation3 + $0x68] sm:$0xff]
    %v1374 = vld [vmem:[#allocation3 + $0x70] sm:$0xff]
    %v1375 = vld [vmem:[#allocation3 + $0x78] sm:$0xff]
    %v1376 = vld [vmem:[#allocation3 + $0x80] sm:$0xff]
    %v1377 = vld [vmem:[#allocation3 + $0x88] sm:$0xff]
    %v1378 = vld [vmem:[#allocation3 + $0x90] sm:$0xff]
    %v1379 = vld [vmem:[#allocation3 + $0x98] sm:$0xff]
    %v1380 = vld [vmem:[#allocation3 + $0xa0] sm:$0xff]
    %v1381 = vld [vmem:[#allocation3 + $0xa8] sm:$0xff]
    %v1382 = vld [vmem:[#allocation3 + $0xb0] sm:$0xff]
    %v1383 = vld [vmem:[#allocation3 + $0xb8] sm:$0xff]
    %v1384 = vld [vmem:[#allocation3 + $0xc0] sm:$0xff]
    %v1385 = vld [vmem:[#allocation3 + $0xc8] sm:$0xff]
    %v1386 = vld [vmem:[#allocation3 + $0xd0] sm:$0xff]
    %v1387 = vld [vmem:[#allocation3 + $0xd8] sm:$0xff]
    %v1388 = vld [vmem:[#allocation3 + $0xe0] sm:$0xff]
    %v1389 = vld [vmem:[#allocation3 + $0xe8] sm:$0xff]
    %v1390 = vld [vmem:[#allocation3 + $0xf0] sm:$0xff]
    %v1391 = vld [vmem:[#allocation3 + $0xf8] sm:$0xff]
    %v1392 = vadd.f32 %v1360, %v1217
    %v1393 = vadd.f32 %v1361, %v1219
    %v1394 = vadd.f32 %v1362, %v1222
    %v1395 = vadd.f32 %v1363, %v1224
    %v1396 = vadd.f32 %v1364, %v1227
    %v1397 = vadd.f32 %v1365, %v1229
    %v1398 = vadd.f32 %v1366, %v1232
    %v1399 = vadd.f32 %v1367, %v1234
    %v1400 = vadd.f32 %v1368, %v1237
    %v1401 = vadd.f32 %v1369, %v1239
    %v1402 = vadd.f32 %v1370, %v1242
    %v1403 = vadd.f32 %v1371, %v1244
    %v1404 = vadd.f32 %v1372, %v1247
    %v1405 = vadd.f32 %v1373, %v1249
    %v1406 = vadd.f32 %v1374, %v1252
    %v1407 = vadd.f32 %v1375, %v1254
    %v1408 = vadd.f32 %v1376, %v1257
    %v1409 = vadd.f32 %v1377, %v1259
    %v1410 = vadd.f32 %v1378, %v1262
    %v1411 = vadd.f32 %v1379, %v1264
    %v1412 = vadd.f32 %v1380, %v1267
    %v1413 = vadd.f32 %v1381, %v1269
    %v1414 = vadd.f32 %v1382, %v1272
    %v1415 = vadd.f32 %v1383, %v1274
    %v1416 = vadd.f32 %v1384, %v1277
    %v1417 = vadd.f32 %v1385, %v1279
    %v1418 = vadd.f32 %v1386, %v1282
    %v1419 = vadd.f32 %v1387, %v1284
    %v1420 = vadd.f32 %v1388, %v1287
    %v1421 = vadd.f32 %v1389, %v1289
    %v1422 = vadd.f32 %v1390, %v1292
    %v1423 = vadd.f32 %v1391, %v1294
    %1424 = vst [vmem:[#allocation3] sm:$0xff] %v1392
    %1425 = vst [vmem:[#allocation3 + $0x8] sm:$0xff] %v1393
    %1426 = vst [vmem:[#allocation3 + $0x10] sm:$0xff] %v1394
    %1427 = vst [vmem:[#allocation3 + $0x18] sm:$0xff] %v1395
    %1428 = vst [vmem:[#allocation3 + $0x20] sm:$0xff] %v1396
    %1429 = vst [vmem:[#allocation3 + $0x28] sm:$0xff] %v1397
    %1430 = vst [vmem:[#allocation3 + $0x30] sm:$0xff] %v1398
    %1431 = vst [vmem:[#allocation3 + $0x38] sm:$0xff] %v1399
    %1432 = vst [vmem:[#allocation3 + $0x40] sm:$0xff] %v1400
    %1433 = vst [vmem:[#allocation3 + $0x48] sm:$0xff] %v1401
    %1434 = vst [vmem:[#allocation3 + $0x50] sm:$0xff] %v1402
    %1435 = vst [vmem:[#allocation3 + $0x58] sm:$0xff] %v1403
    %1436 = vst [vmem:[#allocation3 + $0x60] sm:$0xff] %v1404
    %1437 = vst [vmem:[#allocation3 + $0x68] sm:$0xff] %v1405
    %1438 = vst [vmem:[#allocation3 + $0x70] sm:$0xff] %v1406
    %1439 = vst [vmem:[#allocation3 + $0x78] sm:$0xff] %v1407
    %1440 = vst [vmem:[#allocation3 + $0x80] sm:$0xff] %v1408
    %1441 = vst [vmem:[#allocation3 + $0x88] sm:$0xff] %v1409
    %1442 = vst [vmem:[#allocation3 + $0x90] sm:$0xff] %v1410
    %1443 = vst [vmem:[#allocation3 + $0x98] sm:$0xff] %v1411
    %1444 = vst [vmem:[#allocation3 + $0xa0] sm:$0xff] %v1412
    %1445 = vst [vmem:[#allocation3 + $0xa8] sm:$0xff] %v1413
    %1446 = vst [vmem:[#allocation3 + $0xb0] sm:$0xff] %v1414
    %1447 = vst [vmem:[#allocation3 + $0xb8] sm:$0xff] %v1415
    %1448 = vst [vmem:[#allocation3 + $0xc0] sm:$0xff] %v1416
    %1449 = vst [vmem:[#allocation3 + $0xc8] sm:$0xff] %v1417
    %1450 = vst [vmem:[#allocation3 + $0xd0] sm:$0xff] %v1418
    %1451 = vst [vmem:[#allocation3 + $0xd8] sm:$0xff] %v1419
    %1452 = vst [vmem:[#allocation3 + $0xe0] sm:$0xff] %v1420
    %1453 = vst [vmem:[#allocation3 + $0xe8] sm:$0xff] %v1421
    %1454 = vst [vmem:[#allocation3 + $0xf0] sm:$0xff] %v1422
    %1455 = vst [vmem:[#allocation3 + $0xf8] sm:$0xff] %v1423
    %v1456 = vld [vmem:[%s0] sm:$0xff]
    %v1457 = vld [vmem:[%s0 + $0x8] sm:$0xff]
    %v1458 = vld [vmem:[%s0 + $0x10] sm:$0xff]
    %v1459 = vld [vmem:[%s0 + $0x18] sm:$0xff]
    %v1460 = vld [vmem:[%s0 + $0x20] sm:$0xff]
    %v1461 = vld [vmem:[%s0 + $0x28] sm:$0xff]
    %v1462 = vld [vmem:[%s0 + $0x30] sm:$0xff]
    %v1463 = vld [vmem:[%s0 + $0x38] sm:$0xff]
    %v1464 = vld [vmem:[%s0 + $0x40] sm:$0xff]
    %v1465 = vld [vmem:[%s0 + $0x48] sm:$0xff]
    %v1466 = vld [vmem:[%s0 + $0x50] sm:$0xff]
    %v1467 = vld [vmem:[%s0 + $0x58] sm:$0xff]
    %v1468 = vld [vmem:[%s0 + $0x60] sm:$0xff]
    %v1469 = vld [vmem:[%s0 + $0x68] sm:$0xff]
    %v1470 = vld [vmem:[%s0 + $0x70] sm:$0xff]
    %v1471 = vld [vmem:[%s0 + $0x78] sm:$0xff]
    %v1472 = vld [vmem:[%s0 + $0x80] sm:$0xff]
    %v1473 = vld [vmem:[%s0 + $0x88] sm:$0xff]
    %v1474 = vld [vmem:[%s0 + $0x90] sm:$0xff]
    %v1475 = vld [vmem:[%s0 + $0x98] sm:$0xff]
    %v1476 = vld [vmem:[%s0 + $0xa0] sm:$0xff]
    %v1477 = vld [vmem:[%s0 + $0xa8] sm:$0xff]
    %v1478 = vld [vmem:[%s0 + $0xb0] sm:$0xff]
    %v1479 = vld [vmem:[%s0 + $0xb8] sm:$0xff]
    %v1480 = vld [vmem:[%s0 + $0xc0] sm:$0xff]
    %v1481 = vld [vmem:[%s0 + $0xc8] sm:$0xff]
    %v1482 = vld [vmem:[%s0 + $0xd0] sm:$0xff]
    %v1483 = vld [vmem:[%s0 + $0xd8] sm:$0xff]
    %v1484 = vld [vmem:[%s0 + $0xe0] sm:$0xff]
    %v1485 = vld [vmem:[%s0 + $0xe8] sm:$0xff]
    %v1486 = vld [vmem:[%s0 + $0xf0] sm:$0xff]
    %v1487 = vld [vmem:[%s0 + $0xf8] sm:$0xff]
    %v1488 = vld [vmem:[#allocation2] sm:$0xf]
    %v1489 = vld [vmem:[#allocation2 + $0x4] sm:$0xf]
    %v1490 = vld [vmem:[#allocation2 + $0x8] sm:$0xf]
    %v1491 = vld [vmem:[#allocation2 + $0xc] sm:$0xf]
    %v1492 = vld [vmem:[#allocation2 + $0x10] sm:$0xf]
    %v1493 = vld [vmem:[#allocation2 + $0x14] sm:$0xf]
    %v1494 = vld [vmem:[#allocation2 + $0x18] sm:$0xf]
    %v1495 = vld [vmem:[#allocation2 + $0x1c] sm:$0xf]
    %v1496 = vld [vmem:[#allocation2 + $0x20] sm:$0xf]
    %v1497 = vld [vmem:[#allocation2 + $0x24] sm:$0xf]
    %v1498 = vld [vmem:[#allocation2 + $0x28] sm:$0xf]
    %v1499 = vld [vmem:[#allocation2 + $0x2c] sm:$0xf]
    %v1500 = vld [vmem:[#allocation2 + $0x30] sm:$0xf]
    %v1501 = vld [vmem:[#allocation2 + $0x34] sm:$0xf]
    %v1502 = vld [vmem:[#allocation2 + $0x38] sm:$0xf]
    %v1503 = vld [vmem:[#allocation2 + $0x3c] sm:$0xf]
    %v1504 = vld [vmem:[#allocation2 + $0x40] sm:$0xf]
    %v1505 = vld [vmem:[#allocation2 + $0x44] sm:$0xf]
    %v1506 = vld [vmem:[#allocation2 + $0x48] sm:$0xf]
    %v1507 = vld [vmem:[#allocation2 + $0x4c] sm:$0xf]
    %v1508 = vld [vmem:[#allocation2 + $0x50] sm:$0xf]
    %v1509 = vld [vmem:[#allocation2 + $0x54] sm:$0xf]
    %v1510 = vld [vmem:[#allocation2 + $0x58] sm:$0xf]
    %v1511 = vld [vmem:[#allocation2 + $0x5c] sm:$0xf]
    %v1512 = vld [vmem:[#allocation2 + $0x60] sm:$0xf]
    %v1513 = vld [vmem:[#allocation2 + $0x64] sm:$0xf]
    %v1514 = vld [vmem:[#allocation2 + $0x68] sm:$0xf]
    %v1515 = vld [vmem:[#allocation2 + $0x6c] sm:$0xf]
    %v1516 = vld [vmem:[#allocation2 + $0x70] sm:$0xf]
    %v1517 = vld [vmem:[#allocation2 + $0x74] sm:$0xf]
    %v1518 = vld [vmem:[#allocation2 + $0x78] sm:$0xf]
    %v1519 = vld [vmem:[#allocation2 + $0x7c] sm:$0xf]
    %v1552 = vunpack.c.l.b16 %v1456
    %v1553 = vunpack.c.h.b16 %v1456
    %v1554 = vunpack.c.l.b16 %v1457
    %v1555 = vunpack.c.h.b16 %v1457
    %v1556 = vunpack.c.l.b16 %v1458
    %v1557 = vunpack.c.h.b16 %v1458
    %v1558 = vunpack.c.l.b16 %v1459
    %v1559 = vunpack.c.h.b16 %v1459
    %v1560 = vunpack.c.l.b16 %v1460
    %v1561 = vunpack.c.h.b16 %v1460
    %v1562 = vunpack.c.l.b16 %v1461
    %v1563 = vunpack.c.h.b16 %v1461
    %v1564 = vunpack.c.l.b16 %v1462
    %v1565 = vunpack.c.h.b16 %v1462
    %v1566 = vunpack.c.l.b16 %v1463
    %v1567 = vunpack.c.h.b16 %v1463
    %v1568 = vunpack.c.l.b16 %v1464
    %v1569 = vunpack.c.h.b16 %v1464
    %v1570 = vunpack.c.l.b16 %v1465
    %v1571 = vunpack.c.h.b16 %v1465
    %v1572 = vunpack.c.l.b16 %v1466
    %v1573 = vunpack.c.h.b16 %v1466
    %v1574 = vunpack.c.l.b16 %v1467
    %v1575 = vunpack.c.h.b16 %v1467
    %v1576 = vunpack.c.l.b16 %v1468
    %v1577 = vunpack.c.h.b16 %v1468
    %v1578 = vunpack.c.l.b16 %v1469
    %v1579 = vunpack.c.h.b16 %v1469
    %v1580 = vunpack.c.l.b16 %v1470
    %v1581 = vunpack.c.h.b16 %v1470
    %v1582 = vunpack.c.l.b16 %v1471
    %v1583 = vunpack.c.h.b16 %v1471
    %v1584 = vunpack.c.l.b16 %v1472
    %v1585 = vunpack.c.h.b16 %v1472
    %v1586 = vunpack.c.l.b16 %v1473
    %v1587 = vunpack.c.h.b16 %v1473
    %v1588 = vunpack.c.l.b16 %v1474
    %v1589 = vunpack.c.h.b16 %v1474
    %v1590 = vunpack.c.l.b16 %v1475
    %v1591 = vunpack.c.h.b16 %v1475
    %v1592 = vunpack.c.l.b16 %v1476
    %v1593 = vunpack.c.h.b16 %v1476
    %v1594 = vunpack.c.l.b16 %v1477
    %v1595 = vunpack.c.h.b16 %v1477
    %v1596 = vunpack.c.l.b16 %v1478
    %v1597 = vunpack.c.h.b16 %v1478
    %v1598 = vunpack.c.l.b16 %v1479
    %v1599 = vunpack.c.h.b16 %v1479
    %v1600 = vunpack.c.l.b16 %v1480
    %v1601 = vunpack.c.h.b16 %v1480
    %v1602 = vunpack.c.l.b16 %v1481
    %v1603 = vunpack.c.h.b16 %v1481
    %v1604 = vunpack.c.l.b16 %v1482
    %v1605 = vunpack.c.h.b16 %v1482
    %v1606 = vunpack.c.l.b16 %v1483
    %v1607 = vunpack.c.h.b16 %v1483
    %v1608 = vunpack.c.l.b16 %v1484
    %v1609 = vunpack.c.h.b16 %v1484
    %v1610 = vunpack.c.l.b16 %v1485
    %v1611 = vunpack.c.h.b16 %v1485
    %v1612 = vunpack.c.l.b16 %v1486
    %v1613 = vunpack.c.h.b16 %v1486
    %v1614 = vunpack.c.l.b16 %v1487
    %v1615 = vunpack.c.h.b16 %v1487
    %v1616 = vpack.c.b16 %v1554, %v1552
    %v1617 = vpack.c.b16 %v1555, %v1553
    %v1618 = vpack.c.b16 %v1558, %v1556
    %v1619 = vpack.c.b16 %v1559, %v1557
    %v1620 = vpack.c.b16 %v1562, %v1560
    %v1621 = vpack.c.b16 %v1563, %v1561
    %v1622 = vpack.c.b16 %v1566, %v1564
    %v1623 = vpack.c.b16 %v1567, %v1565
    %v1624 = vpack.c.b16 %v1570, %v1568
    %v1625 = vpack.c.b16 %v1571, %v1569
    %v1626 = vpack.c.b16 %v1574, %v1572
    %v1627 = vpack.c.b16 %v1575, %v1573
    %v1628 = vpack.c.b16 %v1578, %v1576
    %v1629 = vpack.c.b16 %v1579, %v1577
    %v1630 = vpack.c.b16 %v1582, %v1580
    %v1631 = vpack.c.b16 %v1583, %v1581
    %v1632 = vpack.c.b16 %v1586, %v1584
    %v1633 = vpack.c.b16 %v1587, %v1585
    %v1634 = vpack.c.b16 %v1590, %v1588
    %v1635 = vpack.c.b16 %v1591, %v1589
    %v1636 = vpack.c.b16 %v1594, %v1592
    %v1637 = vpack.c.b16 %v1595, %v1593
    %v1638 = vpack.c.b16 %v1598, %v1596
    %v1639 = vpack.c.b16 %v1599, %v1597
    %v1640 = vpack.c.b16 %v1602, %v1600
    %v1641 = vpack.c.b16 %v1603, %v1601
    %v1642 = vpack.c.b16 %v1606, %v1604
    %v1643 = vpack.c.b16 %v1607, %v1605
    %v1644 = vpack.c.b16 %v1610, %v1608
    %v1645 = vpack.c.b16 %v1611, %v1609
    %v1646 = vpack.c.b16 %v1614, %v1612
    %v1647 = vpack.c.b16 %v1615, %v1613
    %v1712 = vunpack.c.l.b16 %v1488
    %v1713 = vunpack.c.l.b16 %v1489
    %v1714 = vunpack.c.l.b16 %v1490
    %v1715 = vunpack.c.l.b16 %v1491
    %v1716 = vunpack.c.l.b16 %v1492
    %v1717 = vunpack.c.l.b16 %v1493
    %v1718 = vunpack.c.l.b16 %v1494
    %v1719 = vunpack.c.l.b16 %v1495
    %v1720 = vunpack.c.l.b16 %v1496
    %v1721 = vunpack.c.l.b16 %v1497
    %v1722 = vunpack.c.l.b16 %v1498
    %v1723 = vunpack.c.l.b16 %v1499
    %v1724 = vunpack.c.l.b16 %v1500
    %v1725 = vunpack.c.l.b16 %v1501
    %v1726 = vunpack.c.l.b16 %v1502
    %v1727 = vunpack.c.l.b16 %v1503
    %v1728 = vunpack.c.l.b16 %v1504
    %v1729 = vunpack.c.l.b16 %v1505
    %v1730 = vunpack.c.l.b16 %v1506
    %v1731 = vunpack.c.l.b16 %v1507
    %v1732 = vunpack.c.l.b16 %v1508
    %v1733 = vunpack.c.l.b16 %v1509
    %v1734 = vunpack.c.l.b16 %v1510
    %v1735 = vunpack.c.l.b16 %v1511
    %v1736 = vunpack.c.l.b16 %v1512
    %v1737 = vunpack.c.l.b16 %v1513
    %v1738 = vunpack.c.l.b16 %v1514
    %v1739 = vunpack.c.l.b16 %v1515
    %v1740 = vunpack.c.l.b16 %v1516
    %v1741 = vunpack.c.l.b16 %v1517
    %v1742 = vunpack.c.l.b16 %v1518
    %v1743 = vunpack.c.l.b16 %v1519
    %v1744 = vpack.c.b16 %v1713, %v1712
    %v1745 = vpack.c.b16 %v1715, %v1714
    %v1746 = vpack.c.b16 %v1717, %v1716
    %v1747 = vpack.c.b16 %v1719, %v1718
    %v1748 = vpack.c.b16 %v1721, %v1720
    %v1749 = vpack.c.b16 %v1723, %v1722
    %v1750 = vpack.c.b16 %v1725, %v1724
    %v1751 = vpack.c.b16 %v1727, %v1726
    %v1752 = vpack.c.b16 %v1729, %v1728
    %v1753 = vpack.c.b16 %v1731, %v1730
    %v1754 = vpack.c.b16 %v1733, %v1732
    %v1755 = vpack.c.b16 %v1735, %v1734
    %v1756 = vpack.c.b16 %v1737, %v1736
    %v1757 = vpack.c.b16 %v1739, %v1738
    %v1758 = vpack.c.b16 %v1741, %v1740
    %v1759 = vpack.c.b16 %v1743, %v1742
    %1776 = vmatpush.bf16.msra.mxu0 %v1751
    %1777 = vmatpush.bf16.msra.mxu0 %v1750
    %1778 = vmatpush.bf16.msra.mxu0 %v1749
    %1779 = vmatpush.bf16.msra.mxu0 %v1748
    %1780 = vmatpush.bf16.msra.mxu0 %v1747
    %1781 = vmatpush.bf16.msra.mxu0 %v1746
    %1782 = vmatpush.bf16.msra.mxu0 %v1745
    %1783 = vmatpush.bf16.msra.mxu0 %v1744
    %1784 = vmatmul.bf16.gmra.mxu0 %v1616
    %v1785 = vpop.f32.mrf.mxu0
    %v1786 = vadd.f32 0.0, %v1785
    %v1787 = vpop.f32.mrf.mxu0
    %v1788 = vadd.f32 0.0, %v1787
    %1789 = vmatmul.bf16.gmra.mxu0 %v1618
    %v1790 = vpop.f32.mrf.mxu0
    %v1791 = vadd.f32 0.0, %v1790
    %v1792 = vpop.f32.mrf.mxu0
    %v1793 = vadd.f32 0.0, %v1792
    %1794 = vmatmul.bf16.gmra.mxu0 %v1620
    %v1795 = vpop.f32.mrf.mxu0
    %v1796 = vadd.f32 0.0, %v1795
    %v1797 = vpop.f32.mrf.mxu0
    %v1798 = vadd.f32 0.0, %v1797
    %1799 = vmatmul.bf16.gmra.mxu0 %v1622
    %v1800 = vpop.f32.mrf.mxu0
    %v1801 = vadd.f32 0.0, %v1800
    %v1802 = vpop.f32.mrf.mxu0
    %v1803 = vadd.f32 0.0, %v1802
    %1804 = vmatmul.bf16.gmra.mxu0 %v1624
    %v1805 = vpop.f32.mrf.mxu0
    %v1806 = vadd.f32 0.0, %v1805
    %v1807 = vpop.f32.mrf.mxu0
    %v1808 = vadd.f32 0.0, %v1807
    %1809 = vmatmul.bf16.gmra.mxu0 %v1626
    %v1810 = vpop.f32.mrf.mxu0
    %v1811 = vadd.f32 0.0, %v1810
    %v1812 = vpop.f32.mrf.mxu0
    %v1813 = vadd.f32 0.0, %v1812
    %1814 = vmatmul.bf16.gmra.mxu0 %v1628
    %v1815 = vpop.f32.mrf.mxu0
    %v1816 = vadd.f32 0.0, %v1815
    %v1817 = vpop.f32.mrf.mxu0
    %v1818 = vadd.f32 0.0, %v1817
    %1819 = vmatmul.bf16.gmra.mxu0 %v1630
    %v1820 = vpop.f32.mrf.mxu0
    %v1821 = vadd.f32 0.0, %v1820
    %v1822 = vpop.f32.mrf.mxu0
    %v1823 = vadd.f32 0.0, %v1822
    %1824 = vmatmul.bf16.gmra.mxu0 %v1632
    %v1825 = vpop.f32.mrf.mxu0
    %v1826 = vadd.f32 0.0, %v1825
    %v1827 = vpop.f32.mrf.mxu0
    %v1828 = vadd.f32 0.0, %v1827
    %1829 = vmatmul.bf16.gmra.mxu0 %v1634
    %v1830 = vpop.f32.mrf.mxu0
    %v1831 = vadd.f32 0.0, %v1830
    %v1832 = vpop.f32.mrf.mxu0
    %v1833 = vadd.f32 0.0, %v1832
    %1834 = vmatmul.bf16.gmra.mxu0 %v1636
    %v1835 = vpop.f32.mrf.mxu0
    %v1836 = vadd.f32 0.0, %v1835
    %v1837 = vpop.f32.mrf.mxu0
    %v1838 = vadd.f32 0.0, %v1837
    %1839 = vmatmul.bf16.gmra.mxu0 %v1638
    %v1840 = vpop.f32.mrf.mxu0
    %v1841 = vadd.f32 0.0, %v1840
    %v1842 = vpop.f32.mrf.mxu0
    %v1843 = vadd.f32 0.0, %v1842
    %1844 = vmatmul.bf16.gmra.mxu0 %v1640
    %v1845 = vpop.f32.mrf.mxu0
    %v1846 = vadd.f32 0.0, %v1845
    %v1847 = vpop.f32.mrf.mxu0
    %v1848 = vadd.f32 0.0, %v1847
    %1849 = vmatmul.bf16.gmra.mxu0 %v1642
    %v1850 = vpop.f32.mrf.mxu0
    %v1851 = vadd.f32 0.0, %v1850
    %v1852 = vpop.f32.mrf.mxu0
    %v1853 = vadd.f32 0.0, %v1852
    %1854 = vmatmul.bf16.gmra.mxu0 %v1644
    %v1855 = vpop.f32.mrf.mxu0
    %v1856 = vadd.f32 0.0, %v1855
    %v1857 = vpop.f32.mrf.mxu0
    %v1858 = vadd.f32 0.0, %v1857
    %1859 = vmatmul.bf16.gmra.mxu0 %v1646
    %v1860 = vpop.f32.mrf.mxu0
    %v1861 = vadd.f32 0.0, %v1860
    %v1862 = vpop.f32.mrf.mxu0
    %v1863 = vadd.f32 0.0, %v1862
    %1864 = vdwg.mxu0
    %1865 = vmatpush.bf16.msra.mxu0 %v1759
    %1866 = vmatpush.bf16.msra.mxu0 %v1758
    %1867 = vmatpush.bf16.msra.mxu0 %v1757
    %1868 = vmatpush.bf16.msra.mxu0 %v1756
    %1869 = vmatpush.bf16.msra.mxu0 %v1755
    %1870 = vmatpush.bf16.msra.mxu0 %v1754
    %1871 = vmatpush.bf16.msra.mxu0 %v1753
    %1872 = vmatpush.bf16.msra.mxu0 %v1752
    %1873 = vmatmul.bf16.gmra.mxu0 %v1617
    %v1874 = vpop.f32.mrf.mxu0
    %v1875 = vadd.f32 %v1786, %v1874
    %v1876 = vpop.f32.mrf.mxu0
    %v1877 = vadd.f32 %v1788, %v1876
    %1878 = vmatmul.bf16.gmra.mxu0 %v1619
    %v1879 = vpop.f32.mrf.mxu0
    %v1880 = vadd.f32 %v1791, %v1879
    %v1881 = vpop.f32.mrf.mxu0
    %v1882 = vadd.f32 %v1793, %v1881
    %1883 = vmatmul.bf16.gmra.mxu0 %v1621
    %v1884 = vpop.f32.mrf.mxu0
    %v1885 = vadd.f32 %v1796, %v1884
    %v1886 = vpop.f32.mrf.mxu0
    %v1887 = vadd.f32 %v1798, %v1886
    %1888 = vmatmul.bf16.gmra.mxu0 %v1623
    %v1889 = vpop.f32.mrf.mxu0
    %v1890 = vadd.f32 %v1801, %v1889
    %v1891 = vpop.f32.mrf.mxu0
    %v1892 = vadd.f32 %v1803, %v1891
    %1893 = vmatmul.bf16.gmra.mxu0 %v1625
    %v1894 = vpop.f32.mrf.mxu0
    %v1895 = vadd.f32 %v1806, %v1894
    %v1896 = vpop.f32.mrf.mxu0
    %v1897 = vadd.f32 %v1808, %v1896
    %1898 = vmatmul.bf16.gmra.mxu0 %v1627
    %v1899 = vpop.f32.mrf.mxu0
    %v1900 = vadd.f32 %v1811, %v1899
    %v1901 = vpop.f32.mrf.mxu0
    %v1902 = vadd.f32 %v1813, %v1901
    %1903 = vmatmul.bf16.gmra.mxu0 %v1629
    %v1904 = vpop.f32.mrf.mxu0
    %v1905 = vadd.f32 %v1816, %v1904
    %v1906 = vpop.f32.mrf.mxu0
    %v1907 = vadd.f32 %v1818, %v1906
    %1908 = vmatmul.bf16.gmra.mxu0 %v1631
    %v1909 = vpop.f32.mrf.mxu0
    %v1910 = vadd.f32 %v1821, %v1909
    %v1911 = vpop.f32.mrf.mxu0
    %v1912 = vadd.f32 %v1823, %v1911
    %1913 = vmatmul.bf16.gmra.mxu0 %v1633
    %v1914 = vpop.f32.mrf.mxu0
    %v1915 = vadd.f32 %v1826, %v1914
    %v1916 = vpop.f32.mrf.mxu0
    %v1917 = vadd.f32 %v1828, %v1916
    %1918 = vmatmul.bf16.gmra.mxu0 %v1635
    %v1919 = vpop.f32.mrf.mxu0
    %v1920 = vadd.f32 %v1831, %v1919
    %v1921 = vpop.f32.mrf.mxu0
    %v1922 = vadd.f32 %v1833, %v1921
    %1923 = vmatmul.bf16.gmra.mxu0 %v1637
    %v1924 = vpop.f32.mrf.mxu0
    %v1925 = vadd.f32 %v1836, %v1924
    %v1926 = vpop.f32.mrf.mxu0
    %v1927 = vadd.f32 %v1838, %v1926
    %1928 = vmatmul.bf16.gmra.mxu0 %v1639
    %v1929 = vpop.f32.mrf.mxu0
    %v1930 = vadd.f32 %v1841, %v1929
    %v1931 = vpop.f32.mrf.mxu0
    %v1932 = vadd.f32 %v1843, %v1931
    %1933 = vmatmul.bf16.gmra.mxu0 %v1641
    %v1934 = vpop.f32.mrf.mxu0
    %v1935 = vadd.f32 %v1846, %v1934
    %v1936 = vpop.f32.mrf.mxu0
    %v1937 = vadd.f32 %v1848, %v1936
    %1938 = vmatmul.bf16.gmra.mxu0 %v1643
    %v1939 = vpop.f32.mrf.mxu0
    %v1940 = vadd.f32 %v1851, %v1939
    %v1941 = vpop.f32.mrf.mxu0
    %v1942 = vadd.f32 %v1853, %v1941
    %1943 = vmatmul.bf16.gmra.mxu0 %v1645
    %v1944 = vpop.f32.mrf.mxu0
    %v1945 = vadd.f32 %v1856, %v1944
    %v1946 = vpop.f32.mrf.mxu0
    %v1947 = vadd.f32 %v1858, %v1946
    %1948 = vmatmul.bf16.gmra.mxu0 %v1647
    %v1949 = vpop.f32.mrf.mxu0
    %v1950 = vadd.f32 %v1861, %v1949
    %v1951 = vpop.f32.mrf.mxu0
    %v1952 = vadd.f32 %v1863, %v1951
    %1953 = vdwg.mxu0
    %v1954 = vld [vmem:[#allocation3] sm:$0xff]
    %v1955 = vld [vmem:[#allocation3 + $0x8] sm:$0xff]
    %v1956 = vld [vmem:[#allocation3 + $0x10] sm:$0xff]
    %v1957 = vld [vmem:[#allocation3 + $0x18] sm:$0xff]
    %v1958 = vld [vmem:[#allocation3 + $0x20] sm:$0xff]
    %v1959 = vld [vmem:[#allocation3 + $0x28] sm:$0xff]
    %v1960 = vld [vmem:[#allocation3 + $0x30] sm:$0xff]
    %v1961 = vld [vmem:[#allocation3 + $0x38] sm:$0xff]
    %v1962 = vld [vmem:[#allocation3 + $0x40] sm:$0xff]
    %v1963 = vld [vmem:[#allocation3 + $0x48] sm:$0xff]
    %v1964 = vld [vmem:[#allocation3 + $0x50] sm:$0xff]
    %v1965 = vld [vmem:[#allocation3 + $0x58] sm:$0xff]
    %v1966 = vld [vmem:[#allocation3 + $0x60] sm:$0xff]
    %v1967 = vld [vmem:[#allocation3 + $0x68] sm:$0xff]
    %v1968 = vld [vmem:[#allocation3 + $0x70] sm:$0xff]
    %v1969 = vld [vmem:[#allocation3 + $0x78] sm:$0xff]
    %v1970 = vld [vmem:[#allocation3 + $0x80] sm:$0xff]
    %v1971 = vld [vmem:[#allocation3 + $0x88] sm:$0xff]
    %v1972 = vld [vmem:[#allocation3 + $0x90] sm:$0xff]
    %v1973 = vld [vmem:[#allocation3 + $0x98] sm:$0xff]
    %v1974 = vld [vmem:[#allocation3 + $0xa0] sm:$0xff]
    %v1975 = vld [vmem:[#allocation3 + $0xa8] sm:$0xff]
    %v1976 = vld [vmem:[#allocation3 + $0xb0] sm:$0xff]
    %v1977 = vld [vmem:[#allocation3 + $0xb8] sm:$0xff]
    %v1978 = vld [vmem:[#allocation3 + $0xc0] sm:$0xff]
    %v1979 = vld [vmem:[#allocation3 + $0xc8] sm:$0xff]
    %v1980 = vld [vmem:[#allocation3 + $0xd0] sm:$0xff]
    %v1981 = vld [vmem:[#allocation3 + $0xd8] sm:$0xff]
    %v1982 = vld [vmem:[#allocation3 + $0xe0] sm:$0xff]
    %v1983 = vld [vmem:[#allocation3 + $0xe8] sm:$0xff]
    %v1984 = vld [vmem:[#allocation3 + $0xf0] sm:$0xff]
    %v1985 = vld [vmem:[#allocation3 + $0xf8] sm:$0xff]
    %v1986 = vadd.f32 %v1954, %v1875
    %v1987 = vadd.f32 %v1955, %v1877
    %v1988 = vadd.f32 %v1956, %v1880
    %v1989 = vadd.f32 %v1957, %v1882
    %v1990 = vadd.f32 %v1958, %v1885
    %v1991 = vadd.f32 %v1959, %v1887
    %v1992 = vadd.f32 %v1960, %v1890
    %v1993 = vadd.f32 %v1961, %v1892
    %v1994 = vadd.f32 %v1962, %v1895
    %v1995 = vadd.f32 %v1963, %v1897
    %v1996 = vadd.f32 %v1964, %v1900
    %v1997 = vadd.f32 %v1965, %v1902
    %v1998 = vadd.f32 %v1966, %v1905
    %v1999 = vadd.f32 %v1967, %v1907
    %v2000 = vadd.f32 %v1968, %v1910
    %v2001 = vadd.f32 %v1969, %v1912
    %v2002 = vadd.f32 %v1970, %v1915
    %v2003 = vadd.f32 %v1971, %v1917
    %v2004 = vadd.f32 %v1972, %v1920
    %v2005 = vadd.f32 %v1973, %v1922
    %v2006 = vadd.f32 %v1974, %v1925
    %v2007 = vadd.f32 %v1975, %v1927
    %v2008 = vadd.f32 %v1976, %v1930
    %v2009 = vadd.f32 %v1977, %v1932
    %v2010 = vadd.f32 %v1978, %v1935
    %v2011 = vadd.f32 %v1979, %v1937
    %v2012 = vadd.f32 %v1980, %v1940
    %v2013 = vadd.f32 %v1981, %v1942
    %v2014 = vadd.f32 %v1982, %v1945
    %v2015 = vadd.f32 %v1983, %v1947
    %v2016 = vadd.f32 %v1984, %v1950
    %v2017 = vadd.f32 %v1985, %v1952
    %2018 = vst [vmem:[#allocation3] sm:$0xff] %v1986
    %2019 = vst [vmem:[#allocation3 + $0x8] sm:$0xff] %v1987
    %2020 = vst [vmem:[#allocation3 + $0x10] sm:$0xff] %v1988
    %2021 = vst [vmem:[#allocation3 + $0x18] sm:$0xff] %v1989
    %2022 = vst [vmem:[#allocation3 + $0x20] sm:$0xff] %v1990
    %2023 = vst [vmem:[#allocation3 + $0x28] sm:$0xff] %v1991
    %2024 = vst [vmem:[#allocation3 + $0x30] sm:$0xff] %v1992
    %2025 = vst [vmem:[#allocation3 + $0x38] sm:$0xff] %v1993
    %2026 = vst [vmem:[#allocation3 + $0x40] sm:$0xff] %v1994
    %2027 = vst [vmem:[#allocation3 + $0x48] sm:$0xff] %v1995
    %2028 = vst [vmem:[#allocation3 + $0x50] sm:$0xff] %v1996
    %2029 = vst [vmem:[#allocation3 + $0x58] sm:$0xff] %v1997
    %2030 = vst [vmem:[#allocation3 + $0x60] sm:$0xff] %v1998
    %2031 = vst [vmem:[#allocation3 + $0x68] sm:$0xff] %v1999
    %2032 = vst [vmem:[#allocation3 + $0x70] sm:$0xff] %v2000
    %2033 = vst [vmem:[#allocation3 + $0x78] sm:$0xff] %v2001
    %2034 = vst [vmem:[#allocation3 + $0x80] sm:$0xff] %v2002
    %2035 = vst [vmem:[#allocation3 + $0x88] sm:$0xff] %v2003
    %2036 = vst [vmem:[#allocation3 + $0x90] sm:$0xff] %v2004
    %2037 = vst [vmem:[#allocation3 + $0x98] sm:$0xff] %v2005
    %2038 = vst [vmem:[#allocation3 + $0xa0] sm:$0xff] %v2006
    %2039 = vst [vmem:[#allocation3 + $0xa8] sm:$0xff] %v2007
    %2040 = vst [vmem:[#allocation3 + $0xb0] sm:$0xff] %v2008
    %2041 = vst [vmem:[#allocation3 + $0xb8] sm:$0xff] %v2009
    %2042 = vst [vmem:[#allocation3 + $0xc0] sm:$0xff] %v2010
    %2043 = vst [vmem:[#allocation3 + $0xc8] sm:$0xff] %v2011
    %2044 = vst [vmem:[#allocation3 + $0xd0] sm:$0xff] %v2012
    %2045 = vst [vmem:[#allocation3 + $0xd8] sm:$0xff] %v2013
    %2046 = vst [vmem:[#allocation3 + $0xe0] sm:$0xff] %v2014
    %2047 = vst [vmem:[#allocation3 + $0xe8] sm:$0xff] %v2015
    %2048 = vst [vmem:[#allocation3 + $0xf0] sm:$0xff] %v2016
    %2049 = vst [vmem:[#allocation3 + $0xf8] sm:$0xff] %v2017
    %v2050 = vld [vmem:[#allocation3] sm:$0xff]
    %v2051 = vld [vmem:[#allocation3 + $0x8] sm:$0xff]
    %v2052 = vld [vmem:[#allocation3 + $0x10] sm:$0xff]
    %v2053 = vld [vmem:[#allocation3 + $0x18] sm:$0xff]
    %v2054 = vld [vmem:[#allocation3 + $0x20] sm:$0xff]
    %v2055 = vld [vmem:[#allocation3 + $0x28] sm:$0xff]
    %v2056 = vld [vmem:[#allocation3 + $0x30] sm:$0xff]
    %v2057 = vld [vmem:[#allocation3 + $0x38] sm:$0xff]
    %v2058 = vld [vmem:[#allocation3 + $0x40] sm:$0xff]
    %v2059 = vld [vmem:[#allocation3 + $0x48] sm:$0xff]
    %v2060 = vld [vmem:[#allocation3 + $0x50] sm:$0xff]
    %v2061 = vld [vmem:[#allocation3 + $0x58] sm:$0xff]
    %v2062 = vld [vmem:[#allocation3 + $0x60] sm:$0xff]
    %v2063 = vld [vmem:[#allocation3 + $0x68] sm:$0xff]
    %v2064 = vld [vmem:[#allocation3 + $0x70] sm:$0xff]
    %v2065 = vld [vmem:[#allocation3 + $0x78] sm:$0xff]
    %v2066 = vld [vmem:[#allocation3 + $0x80] sm:$0xff]
    %v2067 = vld [vmem:[#allocation3 + $0x88] sm:$0xff]
    %v2068 = vld [vmem:[#allocation3 + $0x90] sm:$0xff]
    %v2069 = vld [vmem:[#allocation3 + $0x98] sm:$0xff]
    %v2070 = vld [vmem:[#allocation3 + $0xa0] sm:$0xff]
    %v2071 = vld [vmem:[#allocation3 + $0xa8] sm:$0xff]
    %v2072 = vld [vmem:[#allocation3 + $0xb0] sm:$0xff]
    %v2073 = vld [vmem:[#allocation3 + $0xb8] sm:$0xff]
    %v2074 = vld [vmem:[#allocation3 + $0xc0] sm:$0xff]
    %v2075 = vld [vmem:[#allocation3 + $0xc8] sm:$0xff]
    %v2076 = vld [vmem:[#allocation3 + $0xd0] sm:$0xff]
    %v2077 = vld [vmem:[#allocation3 + $0xd8] sm:$0xff]
    %v2078 = vld [vmem:[#allocation3 + $0xe0] sm:$0xff]
    %v2079 = vld [vmem:[#allocation3 + $0xe8] sm:$0xff]
    %v2080 = vld [vmem:[#allocation3 + $0xf0] sm:$0xff]
    %v2081 = vld [vmem:[#allocation3 + $0xf8] sm:$0xff]
    %v2082 = vmul.f32 %v2050, 0.25
    %v2083 = vmul.f32 %v2051, 0.25
    %v2084 = vmul.f32 %v2052, 0.25
    %v2085 = vmul.f32 %v2053, 0.25
    %v2086 = vmul.f32 %v2054, 0.25
    %v2087 = vmul.f32 %v2055, 0.25
    %v2088 = vmul.f32 %v2056, 0.25
    %v2089 = vmul.f32 %v2057, 0.25
    %v2090 = vmul.f32 %v2058, 0.25
    %v2091 = vmul.f32 %v2059, 0.25
    %v2092 = vmul.f32 %v2060, 0.25
    %v2093 = vmul.f32 %v2061, 0.25
    %v2094 = vmul.f32 %v2062, 0.25
    %v2095 = vmul.f32 %v2063, 0.25
    %v2096 = vmul.f32 %v2064, 0.25
    %v2097 = vmul.f32 %v2065, 0.25
    %v2098 = vmul.f32 %v2066, 0.25
    %v2099 = vmul.f32 %v2067, 0.25
    %v2100 = vmul.f32 %v2068, 0.25
    %v2101 = vmul.f32 %v2069, 0.25
    %v2102 = vmul.f32 %v2070, 0.25
    %v2103 = vmul.f32 %v2071, 0.25
    %v2104 = vmul.f32 %v2072, 0.25
    %v2105 = vmul.f32 %v2073, 0.25
    %v2106 = vmul.f32 %v2074, 0.25
    %v2107 = vmul.f32 %v2075, 0.25
    %v2108 = vmul.f32 %v2076, 0.25
    %v2109 = vmul.f32 %v2077, 0.25
    %v2110 = vmul.f32 %v2078, 0.25
    %v2111 = vmul.f32 %v2079, 0.25
    %v2112 = vmul.f32 %v2080, 0.25
    %v2113 = vmul.f32 %v2081, 0.25
    %2114 = vst [vmem:[#allocation3] sm:$0xff] %v2082
    %2115 = vst [vmem:[#allocation3 + $0x8] sm:$0xff] %v2083
    %2116 = vst [vmem:[#allocation3 + $0x10] sm:$0xff] %v2084
    %2117 = vst [vmem:[#allocation3 + $0x18] sm:$0xff] %v2085
    %2118 = vst [vmem:[#allocation3 + $0x20] sm:$0xff] %v2086
    %2119 = vst [vmem:[#allocation3 + $0x28] sm:$0xff] %v2087
    %2120 = vst [vmem:[#allocation3 + $0x30] sm:$0xff] %v2088
    %2121 = vst [vmem:[#allocation3 + $0x38] sm:$0xff] %v2089
    %2122 = vst [vmem:[#allocation3 + $0x40] sm:$0xff] %v2090
    %2123 = vst [vmem:[#allocation3 + $0x48] sm:$0xff] %v2091
    %2124 = vst [vmem:[#allocation3 + $0x50] sm:$0xff] %v2092
    %2125 = vst [vmem:[#allocation3 + $0x58] sm:$0xff] %v2093
    %2126 = vst [vmem:[#allocation3 + $0x60] sm:$0xff] %v2094
    %2127 = vst [vmem:[#allocation3 + $0x68] sm:$0xff] %v2095
    %2128 = vst [vmem:[#allocation3 + $0x70] sm:$0xff] %v2096
    %2129 = vst [vmem:[#allocation3 + $0x78] sm:$0xff] %v2097
    %2130 = vst [vmem:[#allocation3 + $0x80] sm:$0xff] %v2098
    %2131 = vst [vmem:[#allocation3 + $0x88] sm:$0xff] %v2099
    %2132 = vst [vmem:[#allocation3 + $0x90] sm:$0xff] %v2100
    %2133 = vst [vmem:[#allocation3 + $0x98] sm:$0xff] %v2101
    %2134 = vst [vmem:[#allocation3 + $0xa0] sm:$0xff] %v2102
    %2135 = vst [vmem:[#allocation3 + $0xa8] sm:$0xff] %v2103
    %2136 = vst [vmem:[#allocation3 + $0xb0] sm:$0xff] %v2104
    %2137 = vst [vmem:[#allocation3 + $0xb8] sm:$0xff] %v2105
    %2138 = vst [vmem:[#allocation3 + $0xc0] sm:$0xff] %v2106
    %2139 = vst [vmem:[#allocation3 + $0xc8] sm:$0xff] %v2107
    %2140 = vst [vmem:[#allocation3 + $0xd0] sm:$0xff] %v2108
    %2141 = vst [vmem:[#allocation3 + $0xd8] sm:$0xff] %v2109
    %2142 = vst [vmem:[#allocation3 + $0xe0] sm:$0xff] %v2110
    %2143 = vst [vmem:[#allocation3 + $0xe8] sm:$0xff] %v2111
    %2144 = vst [vmem:[#allocation3 + $0xf0] sm:$0xff] %v2112
    %2145 = vst [vmem:[#allocation3 + $0xf8] sm:$0xff] %v2113
    // Predicated region
    $region10: #{geo_conv_network.1} parent=1 // pred_check
      _
    $region11: #{geo_conv_network.1} parent=1 // pred_check_branch
      %2147 = sbr.rel (0) target = $region13
    $region12: #{geo_conv_network.1} parent=1 // pred_region
      %2149 = vsyncadd [#allocation4], 0
      %s2150 = sshll.u32 [#allocation3], 4
      %s2151 = int_to_ptr.vmem [resolvable:$true] %s2150
      %s2152 = sshll.u32 %s2, 4
      %s2153 = int_to_ptr.hbm [resolvable:$true] %s2152
      %2158 = dma.vmem_to_hbm [thread:$0]  %s2151, 4096, %s2153, [#allocation4], 128, 128, 8
    $region13: #{geo_conv_network.1} parent=1 // pred_fallthru
      _
    // Predicated region
    $region14: #{geo_conv_network.1} parent=1 // pred_check
      _
    $region15: #{geo_conv_network.1} parent=1 // pred_check_branch
      %2160 = sbr.rel (0) target = $region17
    $region16: #{geo_conv_network.1} parent=1 // pred_region
      %2162 = dma.done [#allocation4], 4096
    $region17: #{geo_conv_network.1} parent=1 // pred_fallthru
      _
    %2163 = vsyncpa [#allocation4], 1

</llo_original>
